<compile_context>
chip_gen: v5e
topology: v5e:2x2
jax: 0.10.0
libtpu: 0.0.40
codegen_flags: <defaults>
</compile_context>

<pallas_src>
import math

import jax
import jax.numpy as jnp
import numpy as np
from jax.experimental import pallas as pl
from jax.experimental.pallas import tpu as pltpu

# ----------------- small, module-consistent configuration -----------------
B = 2            # batch
T = 16           # input sequence length   (input_shape[0])
F = 4            # input features          (input_shape[1])
C = 16           # num_filters (= attention embed_dim = BiLSTM input, cnn_layers=1)
K = 3            # conv kernel size
POOL = 2         # max-pool size
LP = T // POOL   # sequence length after pooling
E = C            # attention embed dim (1 head)
H = 32           # LSTM hidden size
NSTEPS = 10      # fc output size
NG = 4 * H       # per-direction LSTM gate width
NG2 = 2 * NG     # fused (both directions) gate width = 8*H
G2 = 2 * H       # per-gate lane block width in the fused layout ([fwd H | bwd H])


# ----------------------------- Pallas kernel ------------------------------
def make_kernel(BB):
    """Kernel body specialised for a batch block of BB rows (BB=B gridless, BB=1 gridded)."""

    def kernel(
        x_ref,                   # (BB, T, F)
        wconv_ref,               # (K*F, C)  tap-major rows [W0; W1; W2], BN scale folded
        bconv_ref,               # (1, C)    conv_bias*bn_scale + bn_shift
        wqkv_ref, bqkv_ref,      # (E, 3E), (1, 3E)
        woih_ref,                # (E, 8H)   attention out-proj folded into LSTM in-proj
        boih_ref,                # (1, 8H)   b_o @ W_ih + b_lstm
        whh_ref,                 # (2H, 8H)  block-diagonal recurrent weights, [i|f|o|g]
        fcw_ref, fcb_ref,        # (2H, NSTEPS), (1, NSTEPS)
        out_ref,                 # (BB, NSTEPS)  (or (1, 1, NSTEPS) on the grid path)
        pool_ref,                # VMEM scratch (BB*T, C)
    ):
        f32 = jnp.float32

        # ---- Conv1d(k=3, pad=1) + eval-mode BN + ReLU: in-lane im2col, one MXU matmul ----
        x3 = x_ref[...]                                               # (BB, T, F)
        zrow = jnp.zeros((BB, 1, F), f32)
        xprev = jnp.concatenate([zrow, x3[:, :T - 1, :]], axis=1)     # x[t-1] (zero pad)
        xnext = jnp.concatenate([x3[:, 1:, :], zrow], axis=1)         # x[t+1] (zero pad)
        im2col = jnp.concatenate([xprev, x3, xnext], axis=2).reshape(BB * T, K * F)
        conv2 = jnp.maximum(
            jnp.dot(im2col, wconv_ref[...], preferred_element_type=f32) + bconv_ref[...],
            0.0)                                                      # (BB*T, C)

        # ---- MaxPool1d(2): max with next row, then strided even-row load from scratch ----
        nxt = jnp.concatenate([conv2[1:, :], jnp.zeros((1, C), f32)], axis=0)
        pool_ref[...] = jnp.maximum(conv2, nxt)                       # row r = max(r, r+1)
        pooled2 = pool_ref[pl.ds(0, BB * LP, stride=POOL), :]         # even rows -> (BB*LP, C)

        # ---- single-head self attention (fused QKV; out-proj folded downstream) ----
        qkv = jnp.dot(pooled2, wqkv_ref[...], preferred_element_type=f32) + bqkv_ref[...]
        q = qkv[:, 0:E].reshape(BB, LP, E)
        k = qkv[:, E:2 * E].reshape(BB, LP, E)
        v = qkv[:, 2 * E:3 * E].reshape(BB, LP, E)
        s = jnp.einsum("ble,bme->blm", q, k,
                       preferred_element_type=f32) * (1.0 / math.sqrt(E))
        s = s - jnp.max(s, axis=-1, keepdims=True)
        p = jnp.exp(s)
        p = p * pl.reciprocal(jnp.sum(p, axis=-1, keepdims=True), approx=True)
        ao = jnp.einsum("blm,bme->ble", p, v, preferred_element_type=f32)   # (BB, LP, E)

        # ---- BiLSTM: (out-proj + input-proj) fused matmul hoisted out of the loop ----
        ix = (jnp.dot(ao.reshape(BB * LP, E), woih_ref[...],
                      preferred_element_type=f32) + boih_ref[...])
        ix3 = ix.reshape(BB, LP, NG2)                                 # (BB, LP, 8H)
        lane = jax.lax.broadcasted_iota(jnp.int32, (BB, NG2), 1)
        is_fwd = (lane % G2) < H          # forward-direction lanes within each gate block
        # fwd lanes consume time t, bwd lanes time LP-1-t; hoisted off the recurrence path.
        xs = [jnp.where(is_fwd, ix3[:, t, :], ix3[:, LP - 1 - t, :]) for t in range(LP)]
        whh = whh_ref[...]
        h_pack = jnp.zeros((BB, 2 * H), f32)                          # [h_fwd | h_bwd]
        c_pack = jnp.zeros((BB, 2 * H), f32)
        for t in range(LP):
            gates = xs[t] + jnp.dot(h_pack, whh, preferred_element_type=f32)  # (BB, 8H)
            sig = jax.nn.sigmoid(gates[:, 0:3 * G2])                  # [i | f | o] in one call
            i_a = sig[:, 0:G2]
            f_a = sig[:, G2:2 * G2]
            o_a = sig[:, 2 * G2:3 * G2]
            g_a = jnp.tanh(gates[:, 3 * G2:4 * G2])
            c_pack = f_a * c_pack + i_a * g_a
            h_pack = o_a * jnp.tanh(c_pack)

        # ---- fc on concat(h_fwd, h_bwd) (already packed in h_pack) ----
        res = jnp.dot(h_pack, fcw_ref[...], preferred_element_type=f32) + fcb_ref[...]
        out_ref[...] = res.reshape(out_ref.shape)

    return kernel


KERNEL_PARAM_ORDER = [
    "w_conv", "b_conv", "w_qkv", "b_qkv", "w_oih", "b_oih", "w_hh", "fc_w", "fc_b",
]


def use_batch_parallel_grid():
    # TODO(synk): crude v7x (2-TensorCore) detection via device_kind string; both code
    # paths are numerically identical, this only decides whether to shard the batch.
    try:
        kind = jax.devices()[0].device_kind.lower()
    except Exception:
        return False
    return "v7" in kind


def forward_pallas(x, kparams, batch_parallel=False):
    args = [kparams[n] for n in KERNEL_PARAM_ORDER]
    vmem = pltpu.MemorySpace.VMEM

    if not batch_parallel:
        # v5e / v6e: single gridless program, whole arrays resident in VMEM.
        return pl.pallas_call(
            make_kernel(B),
            out_shape=jax.ShapeDtypeStruct((B, NSTEPS), jnp.float32),
            in_specs=[pl.BlockSpec(memory_space=vmem)] * (1 + len(args)),
            out_specs=pl.BlockSpec(memory_space=vmem),
            scratch_shapes=[pltpu.VMEM((B * T, C), jnp.float32)],
        )(x, *args)

    # v7x: one batch element per grid step, split across the 2 TensorCores.
    def const_spec(a):
        nd = a.ndim
        return pl.BlockSpec(a.shape, lambda b: (0,) * nd)

    out3 = pl.pallas_call(
        make_kernel(1),
        out_shape=jax.ShapeDtypeStruct((B, 1, NSTEPS), jnp.float32),
        grid=(B,),
        in_specs=[pl.BlockSpec((1, T, F), lambda b: (b, 0, 0))]
        + [const_spec(a) for a in args],
        out_specs=pl.BlockSpec((1, 1, NSTEPS), lambda b: (b, 0, 0)),
        scratch_shapes=[pltpu.VMEM((T, C), jnp.float32)],
        compiler_params=pltpu.CompilerParams(dimension_semantics=("parallel",)),
    )(x, *args)
    return out3.reshape(B, NSTEPS)


# ------------------------ deterministic raw parameters ----------------------
def init_raw_params(key):
    ks = jax.random.split(key, 18)

    def rnd(k, shape, scale=0.1):
        return scale * jax.random.normal(k, shape, jnp.float32)

    return {
        # Conv1d(F -> C, kernel=3): torch weight (C, F, K), bias (C,)
        "conv_w": rnd(ks[0], (C, F, K)),
        "conv_b": rnd(ks[1], (C,)),
        # BatchNorm1d(C): eval mode, running_mean=0, running_var=1
        "bn_gamma": 1.0 + rnd(ks[2], (C,)),
        "bn_beta": rnd(ks[3], (C,)),
        # MultiheadAttention(embed_dim=C, num_heads=1)
        "in_proj_w": rnd(ks[4], (3 * E, E)),
        "in_proj_b": rnd(ks[5], (3 * E,)),
        "out_proj_w": rnd(ks[6], (E, E)),
        "out_proj_b": rnd(ks[7], (E,)),
        # BiLSTM, 1 layer; per direction: w_ih (4H, E), w_hh (4H, H), biases (4H,)
        "w_ih_f": rnd(ks[8], (NG, E)), "w_hh_f": rnd(ks[9], (NG, H)),
        "b_ih_f": rnd(ks[10], (NG,)),  "b_hh_f": rnd(ks[11], (NG,)),
        "w_ih_b": rnd(ks[12], (NG, E)), "w_hh_b": rnd(ks[13], (NG, H)),
        "b_ih_b": rnd(ks[14], (NG,)),   "b_hh_b": rnd(ks[15], (NG,)),
        # fc: Linear(2H -> NSTEPS)
        "fc_w": rnd(ks[16], (NSTEPS, 2 * H)),
        "fc_b": rnd(ks[17], (NSTEPS,)),
    }


# ---------------- pack raw params into kernel-ready fused layouts ----------------
def pack_params(raw):
    eps = 1e-5
    bn_scale = raw["bn_gamma"] / jnp.sqrt(1.0 + eps)   # running_mean=0, running_var=1
    bn_shift = raw["bn_beta"]

    # conv taps, row-stacked [W0; W1; W2] with BN scale folded into the columns
    w_conv = jnp.concatenate(
        [raw["conv_w"][:, :, k].T for k in range(K)], axis=0) * bn_scale[None, :]
    b_conv = (raw["conv_b"] * bn_scale + bn_shift).reshape(1, C)

    # attention: fused QKV projection; out-projection folded into the LSTM input proj below
    w_qkv = raw["in_proj_w"].T                          # (E, 3E) = [Wq.T | Wk.T | Wv.T]
    b_qkv = raw["in_proj_b"].reshape(1, 3 * E)
    w_o = raw["out_proj_w"].T                           # (E, E)
    b_o = raw["out_proj_b"].reshape(1, E)

    # fused BiLSTM: gate-major layout [i | f | o | g], each block 2H = [fwd H | bwd H]
    zhh = jnp.zeros((H, H), jnp.float32)
    b_f = raw["b_ih_f"] + raw["b_hh_f"]
    b_b = raw["b_ih_b"] + raw["b_hh_b"]
    gate_order = (0, 1, 3, 2)                           # torch rows [i, f, g, o] -> [i, f, o, g]
    wih_blocks, whh_blocks, b_blocks = [], [], []
    for g in gate_order:
        sl = slice(g * H, (g + 1) * H)
        wih_blocks.append(jnp.concatenate(
            [raw["w_ih_f"][sl].T, raw["w_ih_b"][sl].T], axis=1))          # (E, 2H)
        top = jnp.concatenate([raw["w_hh_f"][sl].T, zhh], axis=1)         # (H, 2H)
        bot = jnp.concatenate([zhh, raw["w_hh_b"][sl].T], axis=1)         # (H, 2H)
        whh_blocks.append(jnp.concatenate([top, bot], axis=0))            # (2H, 2H)
        b_blocks.append(jnp.concatenate([b_f[sl], b_b[sl]]))              # (2H,)
    w_ih = jnp.concatenate(wih_blocks, axis=1)                            # (E, 8H)
    w_hh = jnp.concatenate(whh_blocks, axis=1)                            # (2H, 8H)
    b_lstm = jnp.concatenate(b_blocks).reshape(1, NG2)

    # fold the attention output projection into the LSTM input projection (exact algebra)
    w_oih = jnp.dot(w_o, w_ih, precision="highest")                       # (E, 8H)
    b_oih = jnp.dot(b_o, w_ih, precision="highest") + b_lstm              # (1, 8H)

    return {
        "w_conv": w_conv, "b_conv": b_conv,
        "w_qkv": w_qkv, "b_qkv": b_qkv,
        "w_oih": w_oih, "b_oih": b_oih, "w_hh": w_hh,
        "fc_w": raw["fc_w"].T, "fc_b": raw["fc_b"].reshape(1, NSTEPS),
    }


# ----------------------------- pure-JAX reference ---------------------------
def reference_forward(x, raw):
    eps = 1e-5
    bn_scale = raw["bn_gamma"] / jnp.sqrt(1.0 + eps)
    bn_shift = raw["bn_beta"]

    xp = jnp.pad(x, ((0, 0), (1, 1), (0, 0)))
    conv = sum(jnp.einsum("btf,cf->btc", xp[:, k:k + T, :], raw["conv_w"][:, :, k])
               for k in range(K)) + raw["conv_b"]
    y = jnp.maximum(conv * bn_scale + bn_shift, 0.0)
    pooled = jnp.max(y.reshape(B, LP, POOL, C), axis=2)

    Wq, Wk, Wv = (raw["in_proj_w"][0:E], raw["in_proj_w"][E:2 * E],
                  raw["in_proj_w"][2 * E:3 * E])
    bq, bk, bv = (raw["in_proj_b"][0:E], raw["in_proj_b"][E:2 * E],
                  raw["in_proj_b"][2 * E:3 * E])
    q = pooled @ Wq.T + bq
    k = pooled @ Wk.T + bk
    v = pooled @ Wv.T + bv
    s = jnp.einsum("ble,bme->blm", q, k) / math.sqrt(E)
    p = jax.nn.softmax(s, axis=-1)
    ao = jnp.einsum("blm,bme->ble", p, v) @ raw["out_proj_w"].T + raw["out_proj_b"]

    def run_dir(order, w_ih, w_hh, b_ih, b_hh):
        h = jnp.zeros((B, H), jnp.float32)
        c = jnp.zeros((B, H), jnp.float32)
        for t in order:
            g = ao[:, t, :] @ w_ih.T + h @ w_hh.T + b_ih + b_hh
            i_a = jax.nn.sigmoid(g[:, 0:H])
            f_a = jax.nn.sigmoid(g[:, H:2 * H])
            g_a = jnp.tanh(g[:, 2 * H:3 * H])
            o_a = jax.nn.sigmoid(g[:, 3 * H:4 * H])
            c = f_a * c + i_a * g_a
            h = o_a * jnp.tanh(c)
        return h

    h_f = run_dir(range(LP), raw["w_ih_f"], raw["w_hh_f"], raw["b_ih_f"], raw["b_hh_f"])
    h_b = run_dir(range(LP - 1, -1, -1), raw["w_ih_b"], raw["w_hh_b"],
                  raw["b_ih_b"], raw["b_hh_b"])
    cat = jnp.concatenate([h_f, h_b], axis=1)
    return cat @ raw["fc_w"].T + raw["fc_b"]


# ----------------------------------- main -----------------------------------
if __name__ == "__main__":
    key = jax.random.PRNGKey(0)
    kx, kp = jax.random.split(key)
    x = jax.random.normal(kx, (B, T, F), jnp.float32)

    raw = init_raw_params(kp)
    kparams = pack_params(raw)

    out = forward_pallas(x, kparams, batch_parallel=use_batch_parallel_grid())
    out = jax.block_until_ready(out)
    assert out.shape == (B, NSTEPS)

    ref = reference_forward(x, raw)
    # default (single-pass bf16) MXU precision + approx softmax reciprocal -> looser tolerance
    np.testing.assert_allclose(np.asarray(out), np.asarray(ref), rtol=2e-2, atol=5e-3)

    print("KERNEL_OK")
</pallas_src>

<mosaic_0001>
module attributes {stable_mosaic.version = 11 : i64} {
  func.func @kernel(%arg0: memref<2x16x4xf32, #tpu.memory_space<vmem>>, %arg1: memref<12x16xf32, #tpu.memory_space<vmem>>, %arg2: memref<1x16xf32, #tpu.memory_space<vmem>>, %arg3: memref<16x48xf32, #tpu.memory_space<vmem>>, %arg4: memref<1x48xf32, #tpu.memory_space<vmem>>, %arg5: memref<16x256xf32, #tpu.memory_space<vmem>>, %arg6: memref<1x256xf32, #tpu.memory_space<vmem>>, %arg7: memref<64x256xf32, #tpu.memory_space<vmem>>, %arg8: memref<64x10xf32, #tpu.memory_space<vmem>>, %arg9: memref<1x10xf32, #tpu.memory_space<vmem>>, %arg10: memref<2x10xf32, #tpu.memory_space<vmem>>, %arg11: memref<32x16xf32, #tpu.memory_space<vmem>>) attributes {dimension_semantics = [], scalar_prefetch = 0 : i64, scratch_operands = 1 : i64, tpu.core_type = #tpu.core_type<tc>} {
    %c0 = arith.constant 0 : index
    %c0_0 = arith.constant 0 : index
    %c0_1 = arith.constant 0 : index
    %0 = vector.load %arg0[%c0, %c0_0, %c0_1] : memref<2x16x4xf32, #tpu.memory_space<vmem>>, vector<2x16x4xf32>
    %cst = arith.constant 0.000000e+00 : f32
    %1 = vector.broadcast %cst : f32 to vector<2x1x4xf32>
    %2 = vector.extract_strided_slice %0 {offsets = [0, 0, 0], sizes = [2, 15, 4], strides = [1, 1, 1]} : vector<2x16x4xf32> to vector<2x15x4xf32>
    %3 = tpu.concatenate %1, %2 in 1 : vector<2x1x4xf32>, vector<2x15x4xf32> -> vector<2x16x4xf32>
    %4 = vector.extract_strided_slice %0 {offsets = [0, 1, 0], sizes = [2, 15, 4], strides = [1, 1, 1]} : vector<2x16x4xf32> to vector<2x15x4xf32>
    %5 = tpu.concatenate %4, %1 in 1 : vector<2x15x4xf32>, vector<2x1x4xf32> -> vector<2x16x4xf32>
    %6 = tpu.concatenate %3, %0, %5 in 2 : vector<2x16x4xf32>, vector<2x16x4xf32>, vector<2x16x4xf32> -> vector<2x16x12xf32>
    %7 = vector.shape_cast %6 : vector<2x16x12xf32> to vector<32x12xf32>
    %c0_2 = arith.constant 0 : index
    %c0_3 = arith.constant 0 : index
    %8 = vector.load %arg1[%c0_2, %c0_3] : memref<12x16xf32, #tpu.memory_space<vmem>>, vector<12x16xf32>
    %cst_4 = arith.constant dense<0.000000e+00> : vector<32x16xf32>
    %9 = tpu.matmul %7, %8, %cst_4 {dimension_numbers = #tpu.dot_dimension_numbers<[1], [0], [0], [1], [0, 0, 1, 1], [], []>} : vector<32x12xf32>, vector<12x16xf32>, vector<32x16xf32> -> vector<32x16xf32>
    %c0_5 = arith.constant 0 : index
    %c0_6 = arith.constant 0 : index
    %10 = vector.load %arg2[%c0_5, %c0_6] : memref<1x16xf32, #tpu.memory_space<vmem>>, vector<1x16xf32>
    %11 = vector.broadcast %10 : vector<1x16xf32> to vector<32x16xf32>
    %12 = arith.addf %9, %11 : vector<32x16xf32>
    %cst_7 = arith.constant 0.000000e+00 : f32
    %13 = vector.broadcast %cst_7 : f32 to vector<32x16xf32>
    %14 = arith.maximumf %12, %13 : vector<32x16xf32>
    %15 = vector.extract_strided_slice %14 {offsets = [1, 0], sizes = [31, 16], strides = [1, 1]} : vector<32x16xf32> to vector<31x16xf32>
    %cst_8 = arith.constant 0.000000e+00 : f32
    %16 = vector.broadcast %cst_8 : f32 to vector<1x16xf32>
    %17 = tpu.concatenate %15, %16 in 0 : vector<31x16xf32>, vector<1x16xf32> -> vector<32x16xf32>
    %18 = arith.maximumf %14, %17 : vector<32x16xf32>
    %c0_9 = arith.constant 0 : index
    %c0_10 = arith.constant 0 : index
    %19 = vector.load %arg11[%c0_9, %c0_10] : memref<32x16xf32, #tpu.memory_space<vmem>>, vector<32x16xf32>
    tpu.vector_store %arg11[%c0_9, %c0_10], %18 {strides = array<i32>} : memref<32x16xf32, #tpu.memory_space<vmem>>, vector<32x16xf32>,
    %c0_11 = arith.constant 0 : index
    %c0_12 = arith.constant 0 : index
    %20 = tpu.strided_load %arg11[%c0_11, %c0_12] {strides = array<i32: 2, 1>} : memref<32x16xf32, #tpu.memory_space<vmem>>, vector<16x16xf32>
    %c0_13 = arith.constant 0 : index
    %c0_14 = arith.constant 0 : index
    %21 = vector.load %arg3[%c0_13, %c0_14] : memref<16x48xf32, #tpu.memory_space<vmem>>, vector<16x48xf32>
    %cst_15 = arith.constant dense<0.000000e+00> : vector<16x48xf32>
    %22 = tpu.matmul %20, %21, %cst_15 {dimension_numbers = #tpu.dot_dimension_numbers<[1], [0], [0], [1], [0, 0, 1, 1], [], []>} : vector<16x16xf32>, vector<16x48xf32>, vector<16x48xf32> -> vector<16x48xf32>
    %c0_16 = arith.constant 0 : index
    %c0_17 = arith.constant 0 : index
    %23 = vector.load %arg4[%c0_16, %c0_17] : memref<1x48xf32, #tpu.memory_space<vmem>>, vector<1x48xf32>
    %24 = vector.broadcast %23 : vector<1x48xf32> to vector<16x48xf32>
    %25 = arith.addf %22, %24 : vector<16x48xf32>
    %26 = vector.extract_strided_slice %25 {offsets = [0, 0], sizes = [16, 16], strides = [1, 1]} : vector<16x48xf32> to vector<16x16xf32>
    %27 = vector.shape_cast %26 : vector<16x16xf32> to vector<2x8x16xf32>
    %28 = vector.extract_strided_slice %25 {offsets = [0, 16], sizes = [16, 16], strides = [1, 1]} : vector<16x48xf32> to vector<16x16xf32>
    %29 = vector.shape_cast %28 : vector<16x16xf32> to vector<2x8x16xf32>
    %30 = vector.extract_strided_slice %25 {offsets = [0, 32], sizes = [16, 16], strides = [1, 1]} : vector<16x48xf32> to vector<16x16xf32>
    %31 = vector.shape_cast %30 : vector<16x16xf32> to vector<2x8x16xf32>
    "tpu.trace_start"() <{level = 10 : i32, message = "ble,bme->blm"}> : () -> ()
    %cst_18 = arith.constant dense<0.000000e+00> : vector<2x8x8xf32>
    %32 = tpu.matmul %27, %29, %cst_18 {dimension_numbers = #tpu.dot_dimension_numbers<[2], [2], [1], [1], [0, 0, 0, 1, 1, 1], [0], [0]>} : vector<2x8x16xf32>, vector<2x8x16xf32>, vector<2x8x8xf32> -> vector<2x8x8xf32>
    "tpu.trace_stop"() : () -> ()
    %cst_19 = arith.constant 2.500000e-01 : f32
    %33 = vector.broadcast %cst_19 : f32 to vector<2x8x8xf32>
    %34 = arith.mulf %32, %33 : vector<2x8x8xf32>
    %cst_20 = arith.constant dense<0xFF800000> : vector<2x8xf32>
    %35 = vector.multi_reduction <maximumf>, %34, %cst_20 [2] : vector<2x8x8xf32> to vector<2x8xf32>
    %36 = vector.shape_cast %35 : vector<2x8xf32> to vector<2x8x1xf32>
    %37 = vector.broadcast %36 : vector<2x8x1xf32> to vector<2x8x8xf32>
    %38 = arith.subf %34, %37 : vector<2x8x8xf32>
    %39 = math.exp %38 : vector<2x8x8xf32>
    %cst_21 = arith.constant dense<0.000000e+00> : vector<2x8xf32>
    %40 = vector.multi_reduction <add>, %39, %cst_21 [2] : vector<2x8x8xf32> to vector<2x8xf32>
    %41 = vector.shape_cast %40 : vector<2x8xf32> to vector<2x8x1xf32>
    %42 = tpu.reciprocal %41 {approx = true} : vector<2x8x1xf32> -> vector<2x8x1xf32>
    %43 = vector.broadcast %42 : vector<2x8x1xf32> to vector<2x8x8xf32>
    %44 = arith.mulf %39, %43 : vector<2x8x8xf32>
    "tpu.trace_start"() <{level = 10 : i32, message = "blm,bme->ble"}> : () -> ()
    %cst_22 = arith.constant dense<0.000000e+00> : vector<2x8x16xf32>
    %45 = tpu.matmul %44, %31, %cst_22 {dimension_numbers = #tpu.dot_dimension_numbers<[2], [1], [1], [2], [0, 0, 0, 1, 1, 2], [0], [0]>} : vector<2x8x8xf32>, vector<2x8x16xf32>, vector<2x8x16xf32> -> vector<2x8x16xf32>
    "tpu.trace_stop"() : () -> ()
    %46 = vector.shape_cast %45 : vector<2x8x16xf32> to vector<16x16xf32>
    %c0_23 = arith.constant 0 : index
    %c0_24 = arith.constant 0 : index
    %47 = vector.load %arg5[%c0_23, %c0_24] : memref<16x256xf32, #tpu.memory_space<vmem>>, vector<16x256xf32>
    %cst_25 = arith.constant dense<0.000000e+00> : vector<16x256xf32>
    %48 = tpu.matmul %46, %47, %cst_25 {dimension_numbers = #tpu.dot_dimension_numbers<[1], [0], [0], [1], [0, 0, 1, 1], [], []>} : vector<16x16xf32>, vector<16x256xf32>, vector<16x256xf32> -> vector<16x256xf32>
    %c0_26 = arith.constant 0 : index
    %c0_27 = arith.constant 0 : index
    %49 = vector.load %arg6[%c0_26, %c0_27] : memref<1x256xf32, #tpu.memory_space<vmem>>, vector<1x256xf32>
    %50 = vector.broadcast %49 : vector<1x256xf32> to vector<16x256xf32>
    %51 = arith.addf %48, %50 : vector<16x256xf32>
    %52 = vector.shape_cast %51 : vector<16x256xf32> to vector<2x8x256xf32>
    %53 = tpu.iota {dimensions = array<i32: 1>} : vector<2x256xi32>
    %c64_i32 = arith.constant 64 : i32
    %c0_i32 = arith.constant 0 : i32
    %54 = arith.cmpi eq, %c64_i32, %c0_i32 : i32
    %c1_i32 = arith.constant 1 : i32
    %55 = arith.select %54, %c1_i32, %c64_i32 : i32
    %56 = vector.broadcast %55 : i32 to vector<2x256xi32>
    %57 = arith.remsi %53, %56 : vector<2x256xi32>
    %c0_i32_28 = arith.constant 0 : i32
    %58 = vector.broadcast %c0_i32_28 : i32 to vector<2x256xi32>
    %59 = arith.cmpi ne, %57, %58 : vector<2x256xi32>
    %c0_i32_29 = arith.constant 0 : i32
    %60 = vector.broadcast %c0_i32_29 : i32 to vector<2x256xi32>
    %61 = arith.cmpi slt, %57, %60 : vector<2x256xi32>
    %c0_i32_30 = arith.constant 0 : i32
    %62 = arith.cmpi slt, %55, %c0_i32_30 : i32
    %63 = vector.broadcast %62 : i1 to vector<2x256xi1>
    %64 = vector.broadcast %63 : vector<2x256xi1> to vector<2x256xi1>
    %65 = arith.xori %61, %64 : vector<2x256xi1>
    %66 = arith.andi %65, %59 : vector<2x256xi1>
    %67 = vector.broadcast %55 : i32 to vector<2x256xi32>
    %68 = arith.addi %57, %67 : vector<2x256xi32>
    %69 = arith.select %66, %68, %57 : vector<2x256xi1>, vector<2x256xi32>
    %c32_i32 = arith.constant 32 : i32
    %70 = vector.broadcast %c32_i32 : i32 to vector<2x256xi32>
    %71 = arith.cmpi slt, %69, %70 : vector<2x256xi32>
    %72 = vector.extract_strided_slice %52 {offsets = [0, 0, 0], sizes = [2, 1, 256], strides = [1, 1, 1]} : vector<2x8x256xf32> to vector<2x1x256xf32>
    %73 = vector.shape_cast %72 : vector<2x1x256xf32> to vector<2x256xf32>
    %74 = vector.extract_strided_slice %52 {offsets = [0, 7, 0], sizes = [2, 1, 256], strides = [1, 1, 1]} : vector<2x8x256xf32> to vector<2x1x256xf32>
    %75 = vector.shape_cast %74 : vector<2x1x256xf32> to vector<2x256xf32>
    %76 = arith.select %71, %73, %75 : vector<2x256xi1>, vector<2x256xf32>
    %77 = vector.extract_strided_slice %52 {offsets = [0, 1, 0], sizes = [2, 1, 256], strides = [1, 1, 1]} : vector<2x8x256xf32> to vector<2x1x256xf32>
    %78 = vector.shape_cast %77 : vector<2x1x256xf32> to vector<2x256xf32>
    %79 = vector.extract_strided_slice %52 {offsets = [0, 6, 0], sizes = [2, 1, 256], strides = [1, 1, 1]} : vector<2x8x256xf32> to vector<2x1x256xf32>
    %80 = vector.shape_cast %79 : vector<2x1x256xf32> to vector<2x256xf32>
    %81 = arith.select %71, %78, %80 : vector<2x256xi1>, vector<2x256xf32>
    %82 = vector.extract_strided_slice %52 {offsets = [0, 2, 0], sizes = [2, 1, 256], strides = [1, 1, 1]} : vector<2x8x256xf32> to vector<2x1x256xf32>
    %83 = vector.shape_cast %82 : vector<2x1x256xf32> to vector<2x256xf32>
    %84 = vector.extract_strided_slice %52 {offsets = [0, 5, 0], sizes = [2, 1, 256], strides = [1, 1, 1]} : vector<2x8x256xf32> to vector<2x1x256xf32>
    %85 = vector.shape_cast %84 : vector<2x1x256xf32> to vector<2x256xf32>
    %86 = arith.select %71, %83, %85 : vector<2x256xi1>, vector<2x256xf32>
    %87 = vector.extract_strided_slice %52 {offsets = [0, 3, 0], sizes = [2, 1, 256], strides = [1, 1, 1]} : vector<2x8x256xf32> to vector<2x1x256xf32>
    %88 = vector.shape_cast %87 : vector<2x1x256xf32> to vector<2x256xf32>
    %89 = vector.extract_strided_slice %52 {offsets = [0, 4, 0], sizes = [2, 1, 256], strides = [1, 1, 1]} : vector<2x8x256xf32> to vector<2x1x256xf32>
    %90 = vector.shape_cast %89 : vector<2x1x256xf32> to vector<2x256xf32>
    %91 = arith.select %71, %88, %90 : vector<2x256xi1>, vector<2x256xf32>
    %92 = vector.extract_strided_slice %52 {offsets = [0, 4, 0], sizes = [2, 1, 256], strides = [1, 1, 1]} : vector<2x8x256xf32> to vector<2x1x256xf32>
    %93 = vector.shape_cast %92 : vector<2x1x256xf32> to vector<2x256xf32>
    %94 = vector.extract_strided_slice %52 {offsets = [0, 3, 0], sizes = [2, 1, 256], strides = [1, 1, 1]} : vector<2x8x256xf32> to vector<2x1x256xf32>
    %95 = vector.shape_cast %94 : vector<2x1x256xf32> to vector<2x256xf32>
    %96 = arith.select %71, %93, %95 : vector<2x256xi1>, vector<2x256xf32>
    %97 = vector.extract_strided_slice %52 {offsets = [0, 5, 0], sizes = [2, 1, 256], strides = [1, 1, 1]} : vector<2x8x256xf32> to vector<2x1x256xf32>
    %98 = vector.shape_cast %97 : vector<2x1x256xf32> to vector<2x256xf32>
    %99 = vector.extract_strided_slice %52 {offsets = [0, 2, 0], sizes = [2, 1, 256], strides = [1, 1, 1]} : vector<2x8x256xf32> to vector<2x1x256xf32>
    %100 = vector.shape_cast %99 : vector<2x1x256xf32> to vector<2x256xf32>
    %101 = arith.select %71, %98, %100 : vector<2x256xi1>, vector<2x256xf32>
    %102 = vector.extract_strided_slice %52 {offsets = [0, 6, 0], sizes = [2, 1, 256], strides = [1, 1, 1]} : vector<2x8x256xf32> to vector<2x1x256xf32>
    %103 = vector.shape_cast %102 : vector<2x1x256xf32> to vector<2x256xf32>
    %104 = vector.extract_strided_slice %52 {offsets = [0, 1, 0], sizes = [2, 1, 256], strides = [1, 1, 1]} : vector<2x8x256xf32> to vector<2x1x256xf32>
    %105 = vector.shape_cast %104 : vector<2x1x256xf32> to vector<2x256xf32>
    %106 = arith.select %71, %103, %105 : vector<2x256xi1>, vector<2x256xf32>
    %107 = vector.extract_strided_slice %52 {offsets = [0, 7, 0], sizes = [2, 1, 256], strides = [1, 1, 1]} : vector<2x8x256xf32> to vector<2x1x256xf32>
    %108 = vector.shape_cast %107 : vector<2x1x256xf32> to vector<2x256xf32>
    %109 = vector.extract_strided_slice %52 {offsets = [0, 0, 0], sizes = [2, 1, 256], strides = [1, 1, 1]} : vector<2x8x256xf32> to vector<2x1x256xf32>
    %110 = vector.shape_cast %109 : vector<2x1x256xf32> to vector<2x256xf32>
    %111 = arith.select %71, %108, %110 : vector<2x256xi1>, vector<2x256xf32>
    %c0_31 = arith.constant 0 : index
    %c0_32 = arith.constant 0 : index
    %112 = vector.load %arg7[%c0_31, %c0_32] : memref<64x256xf32, #tpu.memory_space<vmem>>, vector<64x256xf32>
    %cst_33 = arith.constant 0.000000e+00 : f32
    %113 = vector.broadcast %cst_33 : f32 to vector<2x64xf32>
    %cst_34 = arith.constant 0.000000e+00 : f32
    %114 = vector.broadcast %cst_34 : f32 to vector<2x64xf32>
    %cst_35 = arith.constant dense<0.000000e+00> : vector<2x256xf32>
    %115 = tpu.matmul %113, %112, %cst_35 {dimension_numbers = #tpu.dot_dimension_numbers<[1], [0], [0], [1], [0, 0, 1, 1], [], []>} : vector<2x64xf32>, vector<64x256xf32>, vector<2x256xf32> -> vector<2x256xf32>
    %116 = arith.addf %76, %115 : vector<2x256xf32>
    %117 = vector.extract_strided_slice %116 {offsets = [0, 0], sizes = [2, 192], strides = [1, 1]} : vector<2x256xf32> to vector<2x192xf32>
    %118 = arith.negf %117 : vector<2x192xf32>
    %119 = math.exp %118 : vector<2x192xf32>
    %cst_36 = arith.constant 1.000000e+00 : f32
    %120 = vector.broadcast %cst_36 : f32 to vector<2x192xf32>
    %121 = arith.addf %120, %119 : vector<2x192xf32>
    %122 = arith.divf %120, %121 : vector<2x192xf32>
    %123 = vector.extract_strided_slice %122 {offsets = [0, 0], sizes = [2, 64], strides = [1, 1]} : vector<2x192xf32> to vector<2x64xf32>
    %124 = vector.extract_strided_slice %122 {offsets = [0, 64], sizes = [2, 64], strides = [1, 1]} : vector<2x192xf32> to vector<2x64xf32>
    %125 = vector.extract_strided_slice %122 {offsets = [0, 128], sizes = [2, 64], strides = [1, 1]} : vector<2x192xf32> to vector<2x64xf32>
    %126 = vector.extract_strided_slice %116 {offsets = [0, 192], sizes = [2, 64], strides = [1, 1]} : vector<2x256xf32> to vector<2x64xf32>
    %127 = math.tanh %126 : vector<2x64xf32>
    %128 = arith.mulf %124, %114 : vector<2x64xf32>
    %129 = arith.mulf %123, %127 : vector<2x64xf32>
    %130 = arith.addf %128, %129 : vector<2x64xf32>
    %131 = math.tanh %130 : vector<2x64xf32>
    %132 = arith.mulf %125, %131 : vector<2x64xf32>
    %cst_37 = arith.constant dense<0.000000e+00> : vector<2x256xf32>
    %133 = tpu.matmul %132, %112, %cst_37 {dimension_numbers = #tpu.dot_dimension_numbers<[1], [0], [0], [1], [0, 0, 1, 1], [], []>} : vector<2x64xf32>, vector<64x256xf32>, vector<2x256xf32> -> vector<2x256xf32>
    %134 = arith.addf %81, %133 : vector<2x256xf32>
    %135 = vector.extract_strided_slice %134 {offsets = [0, 0], sizes = [2, 192], strides = [1, 1]} : vector<2x256xf32> to vector<2x192xf32>
    %136 = arith.negf %135 : vector<2x192xf32>
    %137 = math.exp %136 : vector<2x192xf32>
    %cst_38 = arith.constant 1.000000e+00 : f32
    %138 = vector.broadcast %cst_38 : f32 to vector<2x192xf32>
    %139 = arith.addf %138, %137 : vector<2x192xf32>
    %140 = arith.divf %138, %139 : vector<2x192xf32>
    %141 = vector.extract_strided_slice %140 {offsets = [0, 0], sizes = [2, 64], strides = [1, 1]} : vector<2x192xf32> to vector<2x64xf32>
    %142 = vector.extract_strided_slice %140 {offsets = [0, 64], sizes = [2, 64], strides = [1, 1]} : vector<2x192xf32> to vector<2x64xf32>
    %143 = vector.extract_strided_slice %140 {offsets = [0, 128], sizes = [2, 64], strides = [1, 1]} : vector<2x192xf32> to vector<2x64xf32>
    %144 = vector.extract_strided_slice %134 {offsets = [0, 192], sizes = [2, 64], strides = [1, 1]} : vector<2x256xf32> to vector<2x64xf32>
    %145 = math.tanh %144 : vector<2x64xf32>
    %146 = arith.mulf %142, %130 : vector<2x64xf32>
    %147 = arith.mulf %141, %145 : vector<2x64xf32>
    %148 = arith.addf %146, %147 : vector<2x64xf32>
    %149 = math.tanh %148 : vector<2x64xf32>
    %150 = arith.mulf %143, %149 : vector<2x64xf32>
    %cst_39 = arith.constant dense<0.000000e+00> : vector<2x256xf32>
    %151 = tpu.matmul %150, %112, %cst_39 {dimension_numbers = #tpu.dot_dimension_numbers<[1], [0], [0], [1], [0, 0, 1, 1], [], []>} : vector<2x64xf32>, vector<64x256xf32>, vector<2x256xf32> -> vector<2x256xf32>
    %152 = arith.addf %86, %151 : vector<2x256xf32>
    %153 = vector.extract_strided_slice %152 {offsets = [0, 0], sizes = [2, 192], strides = [1, 1]} : vector<2x256xf32> to vector<2x192xf32>
    %154 = arith.negf %153 : vector<2x192xf32>
    %155 = math.exp %154 : vector<2x192xf32>
    %cst_40 = arith.constant 1.000000e+00 : f32
    %156 = vector.broadcast %cst_40 : f32 to vector<2x192xf32>
    %157 = arith.addf %156, %155 : vector<2x192xf32>
    %158 = arith.divf %156, %157 : vector<2x192xf32>
    %159 = vector.extract_strided_slice %158 {offsets = [0, 0], sizes = [2, 64], strides = [1, 1]} : vector<2x192xf32> to vector<2x64xf32>
    %160 = vector.extract_strided_slice %158 {offsets = [0, 64], sizes = [2, 64], strides = [1, 1]} : vector<2x192xf32> to vector<2x64xf32>
    %161 = vector.extract_strided_slice %158 {offsets = [0, 128], sizes = [2, 64], strides = [1, 1]} : vector<2x192xf32> to vector<2x64xf32>
    %162 = vector.extract_strided_slice %152 {offsets = [0, 192], sizes = [2, 64], strides = [1, 1]} : vector<2x256xf32> to vector<2x64xf32>
    %163 = math.tanh %162 : vector<2x64xf32>
    %164 = arith.mulf %160, %148 : vector<2x64xf32>
    %165 = arith.mulf %159, %163 : vector<2x64xf32>
    %166 = arith.addf %164, %165 : vector<2x64xf32>
    %167 = math.tanh %166 : vector<2x64xf32>
    %168 = arith.mulf %161, %167 : vector<2x64xf32>
    %cst_41 = arith.constant dense<0.000000e+00> : vector<2x256xf32>
    %169 = tpu.matmul %168, %112, %cst_41 {dimension_numbers = #tpu.dot_dimension_numbers<[1], [0], [0], [1], [0, 0, 1, 1], [], []>} : vector<2x64xf32>, vector<64x256xf32>, vector<2x256xf32> -> vector<2x256xf32>
    %170 = arith.addf %91, %169 : vector<2x256xf32>
    %171 = vector.extract_strided_slice %170 {offsets = [0, 0], sizes = [2, 192], strides = [1, 1]} : vector<2x256xf32> to vector<2x192xf32>
    %172 = arith.negf %171 : vector<2x192xf32>
    %173 = math.exp %172 : vector<2x192xf32>
    %cst_42 = arith.constant 1.000000e+00 : f32
    %174 = vector.broadcast %cst_42 : f32 to vector<2x192xf32>
    %175 = arith.addf %174, %173 : vector<2x192xf32>
    %176 = arith.divf %174, %175 : vector<2x192xf32>
    %177 = vector.extract_strided_slice %176 {offsets = [0, 0], sizes = [2, 64], strides = [1, 1]} : vector<2x192xf32> to vector<2x64xf32>
    %178 = vector.extract_strided_slice %176 {offsets = [0, 64], sizes = [2, 64], strides = [1, 1]} : vector<2x192xf32> to vector<2x64xf32>
    %179 = vector.extract_strided_slice %176 {offsets = [0, 128], sizes = [2, 64], strides = [1, 1]} : vector<2x192xf32> to vector<2x64xf32>
    %180 = vector.extract_strided_slice %170 {offsets = [0, 192], sizes = [2, 64], strides = [1, 1]} : vector<2x256xf32> to vector<2x64xf32>
    %181 = math.tanh %180 : vector<2x64xf32>
    %182 = arith.mulf %178, %166 : vector<2x64xf32>
    %183 = arith.mulf %177, %181 : vector<2x64xf32>
    %184 = arith.addf %182, %183 : vector<2x64xf32>
    %185 = math.tanh %184 : vector<2x64xf32>
    %186 = arith.mulf %179, %185 : vector<2x64xf32>
    %cst_43 = arith.constant dense<0.000000e+00> : vector<2x256xf32>
    %187 = tpu.matmul %186, %112, %cst_43 {dimension_numbers = #tpu.dot_dimension_numbers<[1], [0], [0], [1], [0, 0, 1, 1], [], []>} : vector<2x64xf32>, vector<64x256xf32>, vector<2x256xf32> -> vector<2x256xf32>
    %188 = arith.addf %96, %187 : vector<2x256xf32>
    %189 = vector.extract_strided_slice %188 {offsets = [0, 0], sizes = [2, 192], strides = [1, 1]} : vector<2x256xf32> to vector<2x192xf32>
    %190 = arith.negf %189 : vector<2x192xf32>
    %191 = math.exp %190 : vector<2x192xf32>
    %cst_44 = arith.constant 1.000000e+00 : f32
    %192 = vector.broadcast %cst_44 : f32 to vector<2x192xf32>
    %193 = arith.addf %192, %191 : vector<2x192xf32>
    %194 = arith.divf %192, %193 : vector<2x192xf32>
    %195 = vector.extract_strided_slice %194 {offsets = [0, 0], sizes = [2, 64], strides = [1, 1]} : vector<2x192xf32> to vector<2x64xf32>
    %196 = vector.extract_strided_slice %194 {offsets = [0, 64], sizes = [2, 64], strides = [1, 1]} : vector<2x192xf32> to vector<2x64xf32>
    %197 = vector.extract_strided_slice %194 {offsets = [0, 128], sizes = [2, 64], strides = [1, 1]} : vector<2x192xf32> to vector<2x64xf32>
    %198 = vector.extract_strided_slice %188 {offsets = [0, 192], sizes = [2, 64], strides = [1, 1]} : vector<2x256xf32> to vector<2x64xf32>
    %199 = math.tanh %198 : vector<2x64xf32>
    %200 = arith.mulf %196, %184 : vector<2x64xf32>
    %201 = arith.mulf %195, %199 : vector<2x64xf32>
    %202 = arith.addf %200, %201 : vector<2x64xf32>
    %203 = math.tanh %202 : vector<2x64xf32>
    %204 = arith.mulf %197, %203 : vector<2x64xf32>
    %cst_45 = arith.constant dense<0.000000e+00> : vector<2x256xf32>
    %205 = tpu.matmul %204, %112, %cst_45 {dimension_numbers = #tpu.dot_dimension_numbers<[1], [0], [0], [1], [0, 0, 1, 1], [], []>} : vector<2x64xf32>, vector<64x256xf32>, vector<2x256xf32> -> vector<2x256xf32>
    %206 = arith.addf %101, %205 : vector<2x256xf32>
    %207 = vector.extract_strided_slice %206 {offsets = [0, 0], sizes = [2, 192], strides = [1, 1]} : vector<2x256xf32> to vector<2x192xf32>
    %208 = arith.negf %207 : vector<2x192xf32>
    %209 = math.exp %208 : vector<2x192xf32>
    %cst_46 = arith.constant 1.000000e+00 : f32
    %210 = vector.broadcast %cst_46 : f32 to vector<2x192xf32>
    %211 = arith.addf %210, %209 : vector<2x192xf32>
    %212 = arith.divf %210, %211 : vector<2x192xf32>
    %213 = vector.extract_strided_slice %212 {offsets = [0, 0], sizes = [2, 64], strides = [1, 1]} : vector<2x192xf32> to vector<2x64xf32>
    %214 = vector.extract_strided_slice %212 {offsets = [0, 64], sizes = [2, 64], strides = [1, 1]} : vector<2x192xf32> to vector<2x64xf32>
    %215 = vector.extract_strided_slice %212 {offsets = [0, 128], sizes = [2, 64], strides = [1, 1]} : vector<2x192xf32> to vector<2x64xf32>
    %216 = vector.extract_strided_slice %206 {offsets = [0, 192], sizes = [2, 64], strides = [1, 1]} : vector<2x256xf32> to vector<2x64xf32>
    %217 = math.tanh %216 : vector<2x64xf32>
    %218 = arith.mulf %214, %202 : vector<2x64xf32>
    %219 = arith.mulf %213, %217 : vector<2x64xf32>
    %220 = arith.addf %218, %219 : vector<2x64xf32>
    %221 = math.tanh %220 : vector<2x64xf32>
    %222 = arith.mulf %215, %221 : vector<2x64xf32>
    %cst_47 = arith.constant dense<0.000000e+00> : vector<2x256xf32>
    %223 = tpu.matmul %222, %112, %cst_47 {dimension_numbers = #tpu.dot_dimension_numbers<[1], [0], [0], [1], [0, 0, 1, 1], [], []>} : vector<2x64xf32>, vector<64x256xf32>, vector<2x256xf32> -> vector<2x256xf32>
    %224 = arith.addf %106, %223 : vector<2x256xf32>
    %225 = vector.extract_strided_slice %224 {offsets = [0, 0], sizes = [2, 192], strides = [1, 1]} : vector<2x256xf32> to vector<2x192xf32>
    %226 = arith.negf %225 : vector<2x192xf32>
    %227 = math.exp %226 : vector<2x192xf32>
    %cst_48 = arith.constant 1.000000e+00 : f32
    %228 = vector.broadcast %cst_48 : f32 to vector<2x192xf32>
    %229 = arith.addf %228, %227 : vector<2x192xf32>
    %230 = arith.divf %228, %229 : vector<2x192xf32>
    %231 = vector.extract_strided_slice %230 {offsets = [0, 0], sizes = [2, 64], strides = [1, 1]} : vector<2x192xf32> to vector<2x64xf32>
    %232 = vector.extract_strided_slice %230 {offsets = [0, 64], sizes = [2, 64], strides = [1, 1]} : vector<2x192xf32> to vector<2x64xf32>
    %233 = vector.extract_strided_slice %230 {offsets = [0, 128], sizes = [2, 64], strides = [1, 1]} : vector<2x192xf32> to vector<2x64xf32>
    %234 = vector.extract_strided_slice %224 {offsets = [0, 192], sizes = [2, 64], strides = [1, 1]} : vector<2x256xf32> to vector<2x64xf32>
    %235 = math.tanh %234 : vector<2x64xf32>
    %236 = arith.mulf %232, %220 : vector<2x64xf32>
    %237 = arith.mulf %231, %235 : vector<2x64xf32>
    %238 = arith.addf %236, %237 : vector<2x64xf32>
    %239 = math.tanh %238 : vector<2x64xf32>
    %240 = arith.mulf %233, %239 : vector<2x64xf32>
    %cst_49 = arith.constant dense<0.000000e+00> : vector<2x256xf32>
    %241 = tpu.matmul %240, %112, %cst_49 {dimension_numbers = #tpu.dot_dimension_numbers<[1], [0], [0], [1], [0, 0, 1, 1], [], []>} : vector<2x64xf32>, vector<64x256xf32>, vector<2x256xf32> -> vector<2x256xf32>
    %242 = arith.addf %111, %241 : vector<2x256xf32>
    %243 = vector.extract_strided_slice %242 {offsets = [0, 0], sizes = [2, 192], strides = [1, 1]} : vector<2x256xf32> to vector<2x192xf32>
    %244 = arith.negf %243 : vector<2x192xf32>
    %245 = math.exp %244 : vector<2x192xf32>
    %cst_50 = arith.constant 1.000000e+00 : f32
    %246 = vector.broadcast %cst_50 : f32 to vector<2x192xf32>
    %247 = arith.addf %246, %245 : vector<2x192xf32>
    %248 = arith.divf %246, %247 : vector<2x192xf32>
    %249 = vector.extract_strided_slice %248 {offsets = [0, 0], sizes = [2, 64], strides = [1, 1]} : vector<2x192xf32> to vector<2x64xf32>
    %250 = vector.extract_strided_slice %248 {offsets = [0, 64], sizes = [2, 64], strides = [1, 1]} : vector<2x192xf32> to vector<2x64xf32>
    %251 = vector.extract_strided_slice %248 {offsets = [0, 128], sizes = [2, 64], strides = [1, 1]} : vector<2x192xf32> to vector<2x64xf32>
    %252 = vector.extract_strided_slice %242 {offsets = [0, 192], sizes = [2, 64], strides = [1, 1]} : vector<2x256xf32> to vector<2x64xf32>
    %253 = math.tanh %252 : vector<2x64xf32>
    %254 = arith.mulf %250, %238 : vector<2x64xf32>
    %255 = arith.mulf %249, %253 : vector<2x64xf32>
    %256 = arith.addf %254, %255 : vector<2x64xf32>
    %257 = math.tanh %256 : vector<2x64xf32>
    %258 = arith.mulf %251, %257 : vector<2x64xf32>
    %c0_51 = arith.constant 0 : index
    %c0_52 = arith.constant 0 : index
    %259 = vector.load %arg8[%c0_51, %c0_52] : memref<64x10xf32, #tpu.memory_space<vmem>>, vector<64x10xf32>
    %cst_53 = arith.constant dense<0.000000e+00> : vector<2x10xf32>
    %260 = tpu.matmul %258, %259, %cst_53 {dimension_numbers = #tpu.dot_dimension_numbers<[1], [0], [0], [1], [0, 0, 1, 1], [], []>} : vector<2x64xf32>, vector<64x10xf32>, vector<2x10xf32> -> vector<2x10xf32>
    %c0_54 = arith.constant 0 : index
    %c0_55 = arith.constant 0 : index
    %261 = vector.load %arg9[%c0_54, %c0_55] : memref<1x10xf32, #tpu.memory_space<vmem>>, vector<1x10xf32>
    %262 = vector.broadcast %261 : vector<1x10xf32> to vector<2x10xf32>
    %263 = arith.addf %260, %262 : vector<2x10xf32>
    %c0_56 = arith.constant 0 : index
    %c0_57 = arith.constant 0 : index
    %264 = vector.load %arg10[%c0_56, %c0_57] : memref<2x10xf32, #tpu.memory_space<vmem>>, vector<2x10xf32>
    tpu.vector_store %arg10[%c0_56, %c0_57], %263 {strides = array<i32>} : memref<2x10xf32, #tpu.memory_space<vmem>>, vector<2x10xf32>,
    return
  }
}

</mosaic_0001>

<llo_original>
// kernel: tpu_custom_call.1
$region0: #{tpu_custom_call.1}
  #allocation0 [shape = 'u32[]', space=smem, size = 0x4, offset = 0x4, fixed_abs, tag = 'smem constant byte address 0x4 - core index']
  #allocation1 [shape = 'u32[72,128]{1,0:T(1,128)}', space=vmem, size = 0x9000, scoped, tag = 'internal scratch']
  #allocation2 [shape = 'f32[32,16]{1,0:T(8,128)}', space=vmem, size = 0x4000, scoped, tag = 'scratch operand']
  %s0 = inlined_call_operand.vmem [shape: f32[2,16,4], index: 0, kind: input, shape index: {}]
  %s1 = inlined_call_operand.vmem [shape: f32[12,16], index: 1, kind: input, shape index: {}]
  %s2 = inlined_call_operand.vmem [shape: f32[1,16], index: 2, kind: input, shape index: {}]
  %s3 = inlined_call_operand.vmem [shape: f32[16,48], index: 3, kind: input, shape index: {}]
  %s4 = inlined_call_operand.vmem [shape: f32[1,48], index: 4, kind: input, shape index: {}]
  %s5 = inlined_call_operand.vmem [shape: f32[16,256], index: 5, kind: input, shape index: {}]
  %s6 = inlined_call_operand.vmem [shape: f32[1,256], index: 6, kind: input, shape index: {}]
  %s7 = inlined_call_operand.hbm [shape: f32[64,256], index: 7, kind: input, shape index: {}]
  %s8 = inlined_call_operand.vmem [shape: f32[64,10], index: 8, kind: input, shape index: {}]
  %s9 = inlined_call_operand.vmem [shape: f32[1,10], index: 9, kind: input, shape index: {}]
  %s10 = inlined_call_operand.hbm [shape: f32[2,10], index: 10, kind: output, shape index: {}]
  %s11 = sld [smem:[#allocation0]]
  $region54: #{tpu_custom_call.1} parent=0
    _
  %s13 = ssub.s32 1, %s11
  %s14 = scalar_select 0, %s13, %s11
  $region1: #{tpu_custom_call.1} parent=0
    #allocation3 [shape = 'u8[65536]{0}', space=vmem, size = 0x10000, scoped, tag = 'input window, operand 7, single buffered']
    #allocation4 [shape = 's32[1]{0}', space=sflag, size = 0x4, scoped, tag = 'scoped memory for tpu_custom_call.1']
    #allocation5 [shape = 's32[1]{0}', space=sflag, size = 0x4, scoped, tag = 'scoped memory for tpu_custom_call.1']
    #allocation6 [shape = 'u8[1024]{0}', space=vmem, size = 0x400, scoped, tag = 'output window, operand 0, single buffered']
    %15 = vsyncpa [#allocation4], 0
    %16 = vsyncpa [#allocation5], 0
    // Predicated region
    $region2: #{tpu_custom_call.1} parent=1 // pred_check
      _
    $region3: #{tpu_custom_call.1} parent=1 // pred_check_branch
      %18 = sbr.rel (0) target = $region5
    $region4: #{tpu_custom_call.1} parent=1 // pred_region
      _
    $region5: #{tpu_custom_call.1} parent=1 // pred_fallthru
      _
    // Predicated region
    $region6: #{tpu_custom_call.1} parent=1 // pred_check
      _
    $region7: #{tpu_custom_call.1} parent=1 // pred_check_branch
      %20 = sbr.rel (0) target = $region9
    $region8: #{tpu_custom_call.1} parent=1 // pred_region
      _
    $region9: #{tpu_custom_call.1} parent=1 // pred_fallthru
      _
    // Predicated region
    $region10: #{tpu_custom_call.1} parent=1 // pred_check
      _
    $region11: #{tpu_custom_call.1} parent=1 // pred_check_branch
      %22 = sbr.rel (0) target = $region13
    $region12: #{tpu_custom_call.1} parent=1 // pred_region
      _
    $region13: #{tpu_custom_call.1} parent=1 // pred_fallthru
      _
    // Predicated region
    $region14: #{tpu_custom_call.1} parent=1 // pred_check
      _
    $region15: #{tpu_custom_call.1} parent=1 // pred_check_branch
      %24 = sbr.rel (0) target = $region17
    $region16: #{tpu_custom_call.1} parent=1 // pred_region
      _
    $region17: #{tpu_custom_call.1} parent=1 // pred_fallthru
      _
    // Predicated region
    $region18: #{tpu_custom_call.1} parent=1 // pred_check
      _
    $region19: #{tpu_custom_call.1} parent=1 // pred_check_branch
      %26 = sbr.rel (0) target = $region21
    $region20: #{tpu_custom_call.1} parent=1 // pred_region
      _
    $region21: #{tpu_custom_call.1} parent=1 // pred_fallthru
      _
    // Predicated region
    $region22: #{tpu_custom_call.1} parent=1 // pred_check
      _
    $region23: #{tpu_custom_call.1} parent=1 // pred_check_branch
      %28 = sbr.rel (0) target = $region25
    $region24: #{tpu_custom_call.1} parent=1 // pred_region
      _
    $region25: #{tpu_custom_call.1} parent=1 // pred_fallthru
      _
    // Predicated region
    $region26: #{tpu_custom_call.1} parent=1 // pred_check
      _
    $region27: #{tpu_custom_call.1} parent=1 // pred_check_branch
      %30 = sbr.rel (0) target = $region29
    $region28: #{tpu_custom_call.1} parent=1 // pred_region
      _
    $region29: #{tpu_custom_call.1} parent=1 // pred_fallthru
      _
    // Predicated region
    $region30: #{tpu_custom_call.1} parent=1 // pred_check
      _
    $region31: #{tpu_custom_call.1} parent=1 // pred_check_branch
      %32 = sbr.rel (0) target = $region33
    $region32: #{tpu_custom_call.1} parent=1 // pred_region
      %34 = vsyncadd [#allocation4], 0
      %s35 = sshll.u32 %s7, 4
      %s36 = int_to_ptr.hbm [resolvable:$true] %s35
      %s37 = sshll.u32 [#allocation3], 4
      %s38 = int_to_ptr.vmem [resolvable:$true] %s37
      %43 = dma.hbm_to_vmem [thread:$0]  %s36, 2048, %s38, [#allocation4], 256, 256, 16
    $region33: #{tpu_custom_call.1} parent=1 // pred_fallthru
      _
    // Predicated region
    $region34: #{tpu_custom_call.1} parent=1 // pred_check
      _
    $region35: #{tpu_custom_call.1} parent=1 // pred_check_branch
      %45 = sbr.rel (0) target = $region37
    $region36: #{tpu_custom_call.1} parent=1 // pred_region
      _
    $region37: #{tpu_custom_call.1} parent=1 // pred_fallthru
      _
    // Predicated region
    $region38: #{tpu_custom_call.1} parent=1 // pred_check
      _
    $region39: #{tpu_custom_call.1} parent=1 // pred_check_branch
      %47 = sbr.rel (0) target = $region41
    $region40: #{tpu_custom_call.1} parent=1 // pred_region
      _
    $region41: #{tpu_custom_call.1} parent=1 // pred_fallthru
      _
    // Predicated region
    $region42: #{tpu_custom_call.1} parent=1 // pred_check
      _
    $region43: #{tpu_custom_call.1} parent=1 // pred_check_branch
      %49 = sbr.rel (0) target = $region45
    $region44: #{tpu_custom_call.1} parent=1 // pred_region
      %51 = dma.done [#allocation4], 2048
    $region45: #{tpu_custom_call.1} parent=1 // pred_fallthru
      _
    %v52 = vld [vmem:[%s0] sm:$0xff]
    %v53 = vld [vmem:[%s0 + $0x8] sm:$0xff]
    %v54 = vld [vmem:[%s0 + $0x10] sm:$0xff]
    %v55 = vld [vmem:[%s0 + $0x18] sm:$0xff]
    %vm60 = vcmask 1040384
    %v61 = vrot.slane %v52, 7
    %v62 = vrot.slane %v53, 7
    %v63 = vsel %vm60, %v61, %v62
    %v64 = vrot.slane %v54, 7
    %v65 = vrot.slane %v55, 7
    %v66 = vsel %vm60, %v64, %v65
    %v71 = vsel %vm60, 0.0, %v61
    %v72 = vsel %vm60, 0.0, %v64
    %vm73 = vcmask 1046528
    %v74 = vrot.slane %v52, 1
    %v75 = vrot.slane %v53, 1
    %v76 = vsel %vm73, %v74, %v75
    %v77 = vrot.slane %v54, 1
    %v78 = vrot.slane %v55, 1
    %v79 = vsel %vm73, %v77, %v78
    %v82 = vsel %vm73, %v75, 0.0
    %v83 = vsel %vm73, %v78, 0.0
    %84 = vrot.lane.b32.xlu0 %v52, 4
    %v85 = vpop.permute.xlu0 %84
    %86 = vrot.lane.b32.xlu0 %v53, 4
    %v87 = vpop.permute.xlu0 %86
    %88 = vrot.lane.b32.xlu0 %v54, 4
    %v89 = vpop.permute.xlu0 %88
    %90 = vrot.lane.b32.xlu0 %v55, 4
    %v91 = vpop.permute.xlu0 %90
    %98 = vrot.lane.b32.xlu0 %v76, 8
    %v99 = vpop.permute.xlu0 %98
    %100 = vrot.lane.b32.xlu0 %v82, 8
    %v101 = vpop.permute.xlu0 %100
    %102 = vrot.lane.b32.xlu0 %v79, 8
    %v103 = vpop.permute.xlu0 %102
    %104 = vrot.lane.b32.xlu0 %v83, 8
    %v105 = vpop.permute.xlu0 %104
    %vm110 = vcmask 31744
    %v111 = vsel %vm110, %v71, %v85
    %v112 = vsel %vm110, %v63, %v87
    %v113 = vsel %vm110, %v72, %v89
    %v114 = vsel %vm110, %v66, %v91
    %vm115 = vcmask 64512
    %v116 = vsel %vm115, %v111, %v99
    %v117 = vsel %vm115, %v112, %v101
    %v118 = vsel %vm115, %v113, %v103
    %v119 = vsel %vm115, %v114, %v105
    %v120 = vld [vmem:[%s1] sm:$0xff]
    %v121 = vld [vmem:[%s1 + $0x8] sm:$0xf]
    %v122 = vld [vmem:[%s2] sm:$0x1]
    %v124 = vperm.slane %v122, 0
    %vm126 = vcmask 97280
    %v128 = vsel %vm126, %v116, 0
    %v131 = vsel %vm126, %v117, 0
    %v134 = vsel %vm126, %v118, 0
    %v137 = vsel %vm126, %v119, 0
    %vm139 = vcmask 1043456
    %v141 = vsel %vm139, %v121, 0
    %143 = vmatpush.msra.mxu0 0.0
    %144 = vmatpush.msra.mxu0 0.0
    %145 = vmatpush.msra.mxu0 0.0
    %146 = vmatpush.msra.mxu0 0.0
    %147 = vmatpush.msra.mxu0 0.0
    %148 = vmatpush.msra.mxu0 0.0
    %149 = vmatpush.msra.mxu0 0.0
    %150 = vmatpush.msra.mxu0 0.0
    %151 = vmatpush.msra.mxu0 0.0
    %152 = vmatpush.msra.mxu0 0.0
    %153 = vmatpush.msra.mxu0 0.0
    %154 = vmatpush.msra.mxu0 0.0
    %155 = vmatpush.msra.mxu0 0.0
    %156 = vmatpush.msra.mxu0 0.0
    %157 = vmatpush.msra.mxu0 %v141
    %158 = vmatpush.msra.mxu0 %v120
    %159 = vmatmul.f32.gmra.mxu0 %v128
    %v160 = vpop.f32.mrf.mxu0
    %v161 = vadd.f32 %v124, %v160
    %162 = vmatmul.f32.gmra.mxu0 %v131
    %v163 = vpop.f32.mrf.mxu0
    %v164 = vadd.f32 %v124, %v163
    %165 = vmatmul.f32.gmra.mxu0 %v134
    %v166 = vpop.f32.mrf.mxu0
    %v167 = vadd.f32 %v124, %v166
    %168 = vmatmul.f32.gmra.mxu0 %v137
    %v169 = vpop.f32.mrf.mxu0
    %v170 = vadd.f32 %v124, %v169
    %171 = vdwg.mxu0
    %v172 = vmax.f32 %v161, 0.0
    %v173 = vmax.f32 %v164, 0.0
    %v174 = vmax.f32 %v167, 0.0
    %v175 = vmax.f32 %v170, 0.0
    %v180 = vrot.slane %v172, 1
    %v181 = vrot.slane %v173, 1
    %v182 = vsel %vm73, %v180, %v181
    %v183 = vrot.slane %v174, 1
    %v184 = vsel %vm73, %v181, %v183
    %v185 = vrot.slane %v175, 1
    %v186 = vsel %vm73, %v183, %v185
    %v191 = vsel %vm73, %v185, 0.0
    %v192 = vmax.f32 %v172, %v182
    %v193 = vmax.f32 %v173, %v184
    %v194 = vmax.f32 %v174, %v186
    %v195 = vmax.f32 %v175, %v191
    %vm196 = vcmask 130048
    %197 = vst.msk [vmem:[#allocation2] sm:$0xff] %vm196, %v192
    %198 = vst.msk [vmem:[#allocation2 + $0x8] sm:$0xff] %vm196, %v193
    %199 = vst.msk [vmem:[#allocation2 + $0x10] sm:$0xff] %vm196, %v194
    %200 = vst.msk [vmem:[#allocation2 + $0x18] sm:$0xff] %vm196, %v195
    %v201 = vld [vmem:[#allocation2] ss:$2 sm:$0xff]
    %s202 = scalar_lea.vmem [#allocation2], 16
    %v203 = vld [vmem:[%s202] ss:$2 sm:$0xff]
    %v204 = vld [vmem:[%s3] sm:$0xff]
    %v205 = vld [vmem:[%s3 + $0x8] sm:$0xff]
    %v206 = vld [vmem:[%s4] sm:$0x1]
    %v208 = vperm.slane %v206, 0
    %v211 = vsel %vm196, %v201, 0
    %v214 = vsel %vm196, %v203, 0
    %216 = vmatpush.msra.mxu0 0.0
    %217 = vmatpush.msra.mxu0 0.0
    %218 = vmatpush.msra.mxu0 0.0
    %219 = vmatpush.msra.mxu0 0.0
    %220 = vmatpush.msra.mxu0 0.0
    %221 = vmatpush.msra.mxu0 0.0
    %222 = vmatpush.msra.mxu0 0.0
    %223 = vmatpush.msra.mxu0 0.0
    %224 = vmatpush.msra.mxu0 0.0
    %225 = vmatpush.msra.mxu0 0.0
    %226 = vmatpush.msra.mxu0 0.0
    %227 = vmatpush.msra.mxu0 0.0
    %228 = vmatpush.msra.mxu0 0.0
    %229 = vmatpush.msra.mxu0 0.0
    %230 = vmatpush.msra.mxu0 %v205
    %231 = vmatpush.msra.mxu0 %v204
    %232 = vmatmul.f32.gmra.mxu0 %v211
    %v233 = vpop.f32.mrf.mxu0
    %v234 = vadd.f32 %v208, %v233
    %235 = vmatmul.f32.gmra.mxu0 %v214
    %v236 = vpop.f32.mrf.mxu0
    %v237 = vadd.f32 %v208, %v236
    %238 = vdwg.mxu0
    %240 = vrot.lane.b32.xlu0 %v234, 112
    %v241 = vpop.permute.xlu0 %240
    %v242 = vsel %vm196, %v234, 0
    %v244 = vsel %vm196, %v241, 0
    %246 = vmatpush.xpose.msra.mxu0 0.0
    %247 = vmatpush.xpose.msra.mxu0 0.0
    %248 = vmatpush.xpose.msra.mxu0 0.0
    %249 = vmatpush.xpose.msra.mxu0 0.0
    %250 = vmatpush.xpose.msra.mxu0 0.0
    %251 = vmatpush.xpose.msra.mxu0 0.0
    %252 = vmatpush.xpose.msra.mxu0 0.0
    %253 = vmatpush.xpose.msra.mxu0 0.0
    %254 = vmatpush.xpose.msra.mxu0 0.0
    %255 = vmatpush.xpose.msra.mxu0 0.0
    %256 = vmatpush.xpose.msra.mxu0 0.0
    %257 = vmatpush.xpose.msra.mxu0 0.0
    %258 = vmatpush.xpose.msra.mxu0 0.0
    %259 = vmatpush.xpose.msra.mxu0 0.0
    %260 = vmatpush.xpose.msra.mxu0 0.0
    %261 = vmatpush.xpose.msra.mxu0 %v244
    %262 = vmatmul.f32.gmra.mxu0 %v242
    %v263 = vpop.f32.mrf.mxu0
    %v264 = vadd.f32 0.0, %v263
    %265 = vdwg.mxu0
    %267 = vrot.lane.b32.xlu0 %v237, 112
    %v268 = vpop.permute.xlu0 %267
    %v269 = vsel %vm196, %v237, 0
    %v271 = vsel %vm196, %v268, 0
    %273 = vmatpush.xpose.msra.mxu0 0.0
    %274 = vmatpush.xpose.msra.mxu0 0.0
    %275 = vmatpush.xpose.msra.mxu0 0.0
    %276 = vmatpush.xpose.msra.mxu0 0.0
    %277 = vmatpush.xpose.msra.mxu0 0.0
    %278 = vmatpush.xpose.msra.mxu0 0.0
    %279 = vmatpush.xpose.msra.mxu0 0.0
    %280 = vmatpush.xpose.msra.mxu0 0.0
    %281 = vmatpush.xpose.msra.mxu0 0.0
    %282 = vmatpush.xpose.msra.mxu0 0.0
    %283 = vmatpush.xpose.msra.mxu0 0.0
    %284 = vmatpush.xpose.msra.mxu0 0.0
    %285 = vmatpush.xpose.msra.mxu0 0.0
    %286 = vmatpush.xpose.msra.mxu0 0.0
    %287 = vmatpush.xpose.msra.mxu0 0.0
    %288 = vmatpush.xpose.msra.mxu0 %v271
    %289 = vmatmul.f32.gmra.mxu0 %v269
    %v290 = vpop.f32.mrf.mxu0
    %v291 = vadd.f32 0.0, %v290
    %292 = vdwg.mxu0
    %v293 = vmul.f32 %v264, 0.25
    %v294 = vmul.f32 %v291, 0.25
    %v295 = vsel %vm115, %v293, -inf
    %296 = vmax.xlane.f32.xlu0 %v295
    %v297 = vpop.xlane.xlu0 %296
    %v298 = vsel %vm115, %v294, -inf
    %299 = vmax.xlane.f32.xlu0 %v298
    %v300 = vpop.xlane.xlu0 %299
    %v301 = vsub.f32 %v293, %v297
    %v302 = vsub.f32 %v294, %v300
    %v303 = vmul.f32 %v301, 1.442695
    %v304 = vpow.pop %v303
    %v305 = vmul.f32 %v302, 1.442695
    %v306 = vpow.pop %v305
    %v307 = vsel %vm115, %v304, 0.0
    %308 = vadd.xlane.f32.xlu0 %v307
    %v309 = vpop.xlane.xlu0 %308
    %v310 = vsel %vm115, %v306, 0.0
    %311 = vadd.xlane.f32.xlu0 %v310
    %v312 = vpop.xlane.xlu0 %311
    %v313 = vrcp.pop %v309
    %v314 = vrcp.pop %v312
    %v315 = vmul.f32 %v304, %v313
    %v316 = vmul.f32 %v306, %v314
    %317 = vrot.lane.b32.xlu0 %v234, 96
    %v318 = vpop.permute.xlu0 %317
    %v321 = vsel %vm115, %v315, 0
    %323 = vmatpush.msra.mxu0 0.0
    %324 = vmatpush.msra.mxu0 0.0
    %325 = vmatpush.msra.mxu0 0.0
    %326 = vmatpush.msra.mxu0 0.0
    %327 = vmatpush.msra.mxu0 0.0
    %328 = vmatpush.msra.mxu0 0.0
    %329 = vmatpush.msra.mxu0 0.0
    %330 = vmatpush.msra.mxu0 0.0
    %331 = vmatpush.msra.mxu0 0.0
    %332 = vmatpush.msra.mxu0 0.0
    %333 = vmatpush.msra.mxu0 0.0
    %334 = vmatpush.msra.mxu0 0.0
    %335 = vmatpush.msra.mxu0 0.0
    %336 = vmatpush.msra.mxu0 0.0
    %337 = vmatpush.msra.mxu0 0.0
    %338 = vmatpush.msra.mxu0 %v318
    %339 = vmatmul.f32.gmra.mxu0 %v321
    %v340 = vpop.f32.mrf.mxu0
    %v341 = vadd.f32 0.0, %v340
    %342 = vdwg.mxu0
    %343 = vrot.lane.b32.xlu0 %v237, 96
    %v344 = vpop.permute.xlu0 %343
    %v347 = vsel %vm115, %v316, 0
    %349 = vmatpush.msra.mxu0 0.0
    %350 = vmatpush.msra.mxu0 0.0
    %351 = vmatpush.msra.mxu0 0.0
    %352 = vmatpush.msra.mxu0 0.0
    %353 = vmatpush.msra.mxu0 0.0
    %354 = vmatpush.msra.mxu0 0.0
    %355 = vmatpush.msra.mxu0 0.0
    %356 = vmatpush.msra.mxu0 0.0
    %357 = vmatpush.msra.mxu0 0.0
    %358 = vmatpush.msra.mxu0 0.0
    %359 = vmatpush.msra.mxu0 0.0
    %360 = vmatpush.msra.mxu0 0.0
    %361 = vmatpush.msra.mxu0 0.0
    %362 = vmatpush.msra.mxu0 0.0
    %363 = vmatpush.msra.mxu0 0.0
    %364 = vmatpush.msra.mxu0 %v344
    %365 = vmatmul.f32.gmra.mxu0 %v347
    %v366 = vpop.f32.mrf.mxu0
    %v367 = vadd.f32 0.0, %v366
    %368 = vdwg.mxu0
    %v369 = vld [vmem:[%s5] sm:$0xff]
    %v370 = vld [vmem:[%s5 + $0x8] sm:$0xff]
    %v371 = vld [vmem:[%s5 + $0x10] sm:$0xff]
    %v372 = vld [vmem:[%s5 + $0x18] sm:$0xff]
    %v373 = vld [vmem:[%s6] sm:$0x3]
    %v375 = vperm.slane %v373, 0
    %v376 = vperm.slane %v373, 1
    %v380 = vsel %vm196, %v341, 0
    %v383 = vsel %vm196, %v367, 0
    %385 = vmatpush.msra.mxu0 0.0
    %386 = vmatpush.msra.mxu0 0.0
    %387 = vmatpush.msra.mxu0 0.0
    %388 = vmatpush.msra.mxu0 0.0
    %389 = vmatpush.msra.mxu0 0.0
    %390 = vmatpush.msra.mxu0 0.0
    %391 = vmatpush.msra.mxu0 0.0
    %392 = vmatpush.msra.mxu0 0.0
    %393 = vmatpush.msra.mxu0 0.0
    %394 = vmatpush.msra.mxu0 0.0
    %395 = vmatpush.msra.mxu0 0.0
    %396 = vmatpush.msra.mxu0 0.0
    %397 = vmatpush.msra.mxu0 0.0
    %398 = vmatpush.msra.mxu0 0.0
    %399 = vmatpush.msra.mxu0 %v371
    %400 = vmatpush.msra.mxu0 %v369
    %401 = vmatmul.f32.gmra.mxu0 %v380
    %v402 = vpop.f32.mrf.mxu0
    %v403 = vadd.f32 %v375, %v402
    %404 = vmatmul.f32.gmra.mxu0 %v383
    %v405 = vpop.f32.mrf.mxu0
    %v406 = vadd.f32 %v375, %v405
    %407 = vdwg.mxu0
    %408 = vmatpush.msra.mxu0 0.0
    %409 = vmatpush.msra.mxu0 0.0
    %410 = vmatpush.msra.mxu0 0.0
    %411 = vmatpush.msra.mxu0 0.0
    %412 = vmatpush.msra.mxu0 0.0
    %413 = vmatpush.msra.mxu0 0.0
    %414 = vmatpush.msra.mxu0 0.0
    %415 = vmatpush.msra.mxu0 0.0
    %416 = vmatpush.msra.mxu0 0.0
    %417 = vmatpush.msra.mxu0 0.0
    %418 = vmatpush.msra.mxu0 0.0
    %419 = vmatpush.msra.mxu0 0.0
    %420 = vmatpush.msra.mxu0 0.0
    %421 = vmatpush.msra.mxu0 0.0
    %422 = vmatpush.msra.mxu0 %v372
    %423 = vmatpush.msra.mxu0 %v370
    %424 = vmatmul.f32.gmra.mxu0 %v380
    %v425 = vpop.f32.mrf.mxu0
    %v426 = vadd.f32 %v376, %v425
    %427 = vmatmul.f32.gmra.mxu0 %v383
    %v428 = vpop.f32.mrf.mxu0
    %v429 = vadd.f32 %v376, %v428
    %430 = vdwg.mxu0
    %v431 = vlaneseq
    %v432 = vand.u32 %v431, 127
    %v433 = vadd.s32 %v432, 128
    %vm434 = vcmp.lt.s32.totalorder %v432, 0
    %v435 = vsub.s32 0, %v432
    %v436 = vsel %vm434, %v435, %v432
    %v437 = vshrl.u32 %v436, 6
    %v438 = vand.u32 %v436, 63
    %v439 = vsub.s32 0, %v438
    %v440 = vsel %vm434, %v439, %v438
    %vm441 = vcmp.lt.s32.totalorder %v433, 0
    %v442 = vsub.s32 0, %v433
    %v443 = vsel %vm441, %v442, %v433
    %v444 = vshrl.u32 %v443, 6
    %v445 = vand.u32 %v443, 63
    %v446 = vsub.s32 0, %v445
    %v447 = vsel %vm441, %v446, %v445
    %vm448 = vcmp.ne.s32.totalorder %v440, 0
    %vm449 = vcmp.ne.s32.totalorder %v447, 0
    %vm450 = vcmp.lt.s32.totalorder %v440, 0
    %vm451 = vcmp.lt.s32.totalorder %v447, 0
    %vm452 = vmand %vm450, %vm448
    %vm453 = vmand %vm451, %vm449
    %v454 = vadd.s32 %v440, 64
    %v455 = vadd.s32 %v447, 64
    %v456 = vsel %vm452, %v454, %v440
    %v457 = vsel %vm453, %v455, %v447
    %vm458 = vcmp.lt.s32.totalorder %v456, 32
    %vm459 = vcmp.lt.s32.totalorder %v457, 32
    %v464 = vrot.slane %v406, 7
    %vm465 = vcmask 1041409
    %v466 = vsel %vm465, %v464, %v403
    %v467 = vrot.slane %v429, 7
    %v468 = vsel %vm465, %v467, %v426
    %v471 = vrot.slane %v403, 7
    %v472 = vrot.slane %v406, 6
    %v473 = vsel %vm465, %v472, %v471
    %v474 = vrot.slane %v426, 7
    %v475 = vrot.slane %v429, 6
    %v476 = vsel %vm465, %v475, %v474
    %v479 = vsel %vm458, %v466, %v473
    %v480 = vsel %vm459, %v468, %v476
    %v481 = vrot.slane %v403, 1
    %v482 = vsel %vm465, %v406, %v481
    %v483 = vrot.slane %v426, 1
    %v484 = vsel %vm465, %v429, %v483
    %v487 = vrot.slane %v403, 6
    %v488 = vrot.slane %v406, 5
    %v489 = vsel %vm465, %v488, %v487
    %v490 = vrot.slane %v426, 6
    %v491 = vrot.slane %v429, 5
    %v492 = vsel %vm465, %v491, %v490
    %v495 = vsel %vm458, %v482, %v489
    %v496 = vsel %vm459, %v484, %v492
    %v497 = vrot.slane %v403, 2
    %v498 = vrot.slane %v406, 1
    %v499 = vsel %vm465, %v498, %v497
    %v500 = vrot.slane %v426, 2
    %v501 = vrot.slane %v429, 1
    %v502 = vsel %vm465, %v501, %v500
    %v505 = vrot.slane %v403, 5
    %v506 = vrot.slane %v406, 4
    %v507 = vsel %vm465, %v506, %v505
    %v508 = vrot.slane %v426, 5
    %v509 = vrot.slane %v429, 4
    %v510 = vsel %vm465, %v509, %v508
    %v513 = vsel %vm458, %v499, %v507
    %v514 = vsel %vm459, %v502, %v510
    %v515 = vrot.slane %v403, 3
    %v516 = vrot.slane %v406, 2
    %v517 = vsel %vm465, %v516, %v515
    %v518 = vrot.slane %v426, 3
    %v519 = vrot.slane %v429, 2
    %v520 = vsel %vm465, %v519, %v518
    %v523 = vrot.slane %v403, 4
    %v524 = vrot.slane %v406, 3
    %v525 = vsel %vm465, %v524, %v523
    %v526 = vrot.slane %v426, 4
    %v527 = vrot.slane %v429, 3
    %v528 = vsel %vm465, %v527, %v526
    %v531 = vsel %vm458, %v517, %v525
    %v532 = vsel %vm459, %v520, %v528
    %v533 = vsel %vm458, %v525, %v517
    %v534 = vsel %vm459, %v528, %v520
    %v535 = vsel %vm458, %v507, %v499
    %v536 = vsel %vm459, %v510, %v502
    %v537 = vsel %vm458, %v489, %v482
    %v538 = vsel %vm459, %v492, %v484
    %v539 = vsel %vm458, %v473, %v466
    %v540 = vsel %vm459, %v476, %v468
    %v541 = vld [vmem:[#allocation3] sm:$0xff]
    %v542 = vld [vmem:[#allocation3 + $0x8] sm:$0xff]
    %v543 = vld [vmem:[#allocation3 + $0x10] sm:$0xff]
    %v544 = vld [vmem:[#allocation3 + $0x18] sm:$0xff]
    %v545 = vld [vmem:[#allocation3 + $0x20] sm:$0xff]
    %v546 = vld [vmem:[#allocation3 + $0x28] sm:$0xff]
    %v547 = vld [vmem:[#allocation3 + $0x30] sm:$0xff]
    %v548 = vld [vmem:[#allocation3 + $0x38] sm:$0xff]
    %v549 = vld [vmem:[#allocation3 + $0x40] sm:$0xff]
    %v550 = vld [vmem:[#allocation3 + $0x48] sm:$0xff]
    %v551 = vld [vmem:[#allocation3 + $0x50] sm:$0xff]
    %v552 = vld [vmem:[#allocation3 + $0x58] sm:$0xff]
    %v553 = vld [vmem:[#allocation3 + $0x60] sm:$0xff]
    %v554 = vld [vmem:[#allocation3 + $0x68] sm:$0xff]
    %v555 = vld [vmem:[#allocation3 + $0x70] sm:$0xff]
    %v556 = vld [vmem:[#allocation3 + $0x78] sm:$0xff]
    %vm557 = vcmask 523264
    %v559 = vsel %vm557, 0.0, 0
    %561 = vmatpush.msra.mxu0 0.0
    %562 = vmatpush.msra.mxu0 0.0
    %563 = vmatpush.msra.mxu0 0.0
    %564 = vmatpush.msra.mxu0 0.0
    %565 = vmatpush.msra.mxu0 0.0
    %566 = vmatpush.msra.mxu0 0.0
    %567 = vmatpush.msra.mxu0 0.0
    %568 = vmatpush.msra.mxu0 0.0
    %569 = vmatpush.msra.mxu0 %v555
    %570 = vmatpush.msra.mxu0 %v553
    %571 = vmatpush.msra.mxu0 %v551
    %572 = vmatpush.msra.mxu0 %v549
    %573 = vmatpush.msra.mxu0 %v547
    %574 = vmatpush.msra.mxu0 %v545
    %575 = vmatpush.msra.mxu0 %v543
    %576 = vmatpush.msra.mxu0 %v541
    %577 = vmatmul.f32.gmra.mxu0 %v559
    %v578 = vpop.f32.mrf.mxu0
    %v579 = vadd.f32 0.0, %v578
    %580 = vdwg.mxu0
    %581 = vmatpush.msra.mxu0 0.0
    %582 = vmatpush.msra.mxu0 0.0
    %583 = vmatpush.msra.mxu0 0.0
    %584 = vmatpush.msra.mxu0 0.0
    %585 = vmatpush.msra.mxu0 0.0
    %586 = vmatpush.msra.mxu0 0.0
    %587 = vmatpush.msra.mxu0 0.0
    %588 = vmatpush.msra.mxu0 0.0
    %589 = vmatpush.msra.mxu0 %v556
    %590 = vmatpush.msra.mxu0 %v554
    %591 = vmatpush.msra.mxu0 %v552
    %592 = vmatpush.msra.mxu0 %v550
    %593 = vmatpush.msra.mxu0 %v548
    %594 = vmatpush.msra.mxu0 %v546
    %595 = vmatpush.msra.mxu0 %v544
    %596 = vmatpush.msra.mxu0 %v542
    %597 = vmatmul.f32.gmra.mxu0 %v559
    %v598 = vpop.f32.mrf.mxu0
    %v599 = vadd.f32 0.0, %v598
    %600 = vdwg.mxu0
    %v601 = vadd.f32 %v479, %v579
    %v602 = vadd.f32 %v480, %v599
    %v603 = vxor.u32 %v601, 2147483648
    %v604 = vxor.u32 %v602, 2147483648
    %v605 = vmul.f32 %v603, 1.442695
    %v606 = vpow.pop %v605
    %v607 = vmul.f32 %v604, 1.442695
    %v608 = vpow.pop %v607
    %v609 = vadd.f32 %v606, 1.0
    %v610 = vadd.f32 %v608, 1.0
    %v611 = vrcp.pop %v609
    %v612 = vmul.f32 %v609, %v611
    %v613 = vsub.f32 1.0, %v612
    %v614 = vmul.f32 %v611, %v613
    %v615 = vadd.f32 %v611, %v614
    %vm616 = vweird.f32 %v609
    %vm617 = vweird.f32 %v611
    %vm618 = vmor %vm616, %vm617
    %v619 = vsel %vm618, %v611, %v615
    %v620 = vand.u32 2147483647, %v609
    %vm621 = vcmp.eq.f32.partialorder %v620, 8.507059e+37
    %v622 = vand.u32 %v609, 2147483648
    %v623 = vor.u32 1.1754944e-38, %v622
    %v624 = vsel %vm621, %v623, %v619
    %v625 = vmul.f32 1.0, %v624
    %v626 = vrcp.pop %v610
    %v627 = vmul.f32 %v610, %v626
    %v628 = vsub.f32 1.0, %v627
    %v629 = vmul.f32 %v626, %v628
    %v630 = vadd.f32 %v626, %v629
    %vm631 = vweird.f32 %v610
    %vm632 = vweird.f32 %v626
    %vm633 = vmor %vm631, %vm632
    %v634 = vsel %vm633, %v626, %v630
    %v635 = vand.u32 2147483647, %v610
    %vm636 = vcmp.eq.f32.partialorder %v635, 8.507059e+37
    %v637 = vand.u32 %v610, 2147483648
    %v638 = vor.u32 1.1754944e-38, %v637
    %v639 = vsel %vm636, %v638, %v634
    %v640 = vmul.f32 1.0, %v639
    %v641 = vtanh.pop %v602
    %v642 = vmul.f32 %v625, 0.0
    %644 = vrot.lane.b32.xlu0 %v641, 64
    %v645 = vpop.permute.xlu0 %644
    %v647 = vmul.f32 %v625, %v645
    %649 = vrot.lane.b32.xlu0 %v647, 64
    %v650 = vpop.permute.xlu0 %649
    %v652 = vadd.f32 %v642, %v650
    %v653 = vtanh.pop %v652
    %655 = vrot.lane.b32.xlu0 %v653, 64
    %v656 = vpop.permute.xlu0 %655
    %v658 = vmul.f32 %v640, %v656
    %v660 = vsel %vm557, %v658, 0
    %662 = vmatpush.msra.mxu0 0.0
    %663 = vmatpush.msra.mxu0 0.0
    %664 = vmatpush.msra.mxu0 0.0
    %665 = vmatpush.msra.mxu0 0.0
    %666 = vmatpush.msra.mxu0 0.0
    %667 = vmatpush.msra.mxu0 0.0
    %668 = vmatpush.msra.mxu0 0.0
    %669 = vmatpush.msra.mxu0 0.0
    %670 = vmatpush.msra.mxu0 %v555
    %671 = vmatpush.msra.mxu0 %v553
    %672 = vmatpush.msra.mxu0 %v551
    %673 = vmatpush.msra.mxu0 %v549
    %674 = vmatpush.msra.mxu0 %v547
    %675 = vmatpush.msra.mxu0 %v545
    %676 = vmatpush.msra.mxu0 %v543
    %677 = vmatpush.msra.mxu0 %v541
    %678 = vmatmul.f32.gmra.mxu0 %v660
    %v679 = vpop.f32.mrf.mxu0
    %v680 = vadd.f32 0.0, %v679
    %681 = vdwg.mxu0
    %682 = vmatpush.msra.mxu0 0.0
    %683 = vmatpush.msra.mxu0 0.0
    %684 = vmatpush.msra.mxu0 0.0
    %685 = vmatpush.msra.mxu0 0.0
    %686 = vmatpush.msra.mxu0 0.0
    %687 = vmatpush.msra.mxu0 0.0
    %688 = vmatpush.msra.mxu0 0.0
    %689 = vmatpush.msra.mxu0 0.0
    %690 = vmatpush.msra.mxu0 %v556
    %691 = vmatpush.msra.mxu0 %v554
    %692 = vmatpush.msra.mxu0 %v552
    %693 = vmatpush.msra.mxu0 %v550
    %694 = vmatpush.msra.mxu0 %v548
    %695 = vmatpush.msra.mxu0 %v546
    %696 = vmatpush.msra.mxu0 %v544
    %697 = vmatpush.msra.mxu0 %v542
    %698 = vmatmul.f32.gmra.mxu0 %v660
    %v699 = vpop.f32.mrf.mxu0
    %v700 = vadd.f32 0.0, %v699
    %701 = vdwg.mxu0
    %v702 = vadd.f32 %v495, %v680
    %v703 = vadd.f32 %v496, %v700
    %v704 = vxor.u32 %v702, 2147483648
    %v705 = vxor.u32 %v703, 2147483648
    %v706 = vmul.f32 %v704, 1.442695
    %v707 = vpow.pop %v706
    %v708 = vmul.f32 %v705, 1.442695
    %v709 = vpow.pop %v708
    %v710 = vadd.f32 %v707, 1.0
    %v711 = vadd.f32 %v709, 1.0
    %v712 = vrcp.pop %v710
    %v713 = vmul.f32 %v710, %v712
    %v714 = vsub.f32 1.0, %v713
    %v715 = vmul.f32 %v712, %v714
    %v716 = vadd.f32 %v712, %v715
    %vm717 = vweird.f32 %v710
    %vm718 = vweird.f32 %v712
    %vm719 = vmor %vm717, %vm718
    %v720 = vsel %vm719, %v712, %v716
    %v721 = vand.u32 2147483647, %v710
    %vm722 = vcmp.eq.f32.partialorder %v721, 8.507059e+37
    %v723 = vand.u32 %v710, 2147483648
    %v724 = vor.u32 1.1754944e-38, %v723
    %v725 = vsel %vm722, %v724, %v720
    %v726 = vmul.f32 1.0, %v725
    %v727 = vrcp.pop %v711
    %v728 = vmul.f32 %v711, %v727
    %v729 = vsub.f32 1.0, %v728
    %v730 = vmul.f32 %v727, %v729
    %v731 = vadd.f32 %v727, %v730
    %vm732 = vweird.f32 %v711
    %vm733 = vweird.f32 %v727
    %vm734 = vmor %vm732, %vm733
    %v735 = vsel %vm734, %v727, %v731
    %v736 = vand.u32 2147483647, %v711
    %vm737 = vcmp.eq.f32.partialorder %v736, 8.507059e+37
    %v738 = vand.u32 %v711, 2147483648
    %v739 = vor.u32 1.1754944e-38, %v738
    %v740 = vsel %vm737, %v739, %v735
    %v741 = vmul.f32 1.0, %v740
    %v742 = vtanh.pop %v703
    %v743 = vmul.f32 %v726, %v652
    %745 = vrot.lane.b32.xlu0 %v742, 64
    %v746 = vpop.permute.xlu0 %745
    %v748 = vmul.f32 %v726, %v746
    %750 = vrot.lane.b32.xlu0 %v748, 64
    %v751 = vpop.permute.xlu0 %750
    %v753 = vadd.f32 %v743, %v751
    %v754 = vtanh.pop %v753
    %756 = vrot.lane.b32.xlu0 %v754, 64
    %v757 = vpop.permute.xlu0 %756
    %v759 = vmul.f32 %v741, %v757
    %v761 = vsel %vm557, %v759, 0
    %763 = vmatpush.msra.mxu0 0.0
    %764 = vmatpush.msra.mxu0 0.0
    %765 = vmatpush.msra.mxu0 0.0
    %766 = vmatpush.msra.mxu0 0.0
    %767 = vmatpush.msra.mxu0 0.0
    %768 = vmatpush.msra.mxu0 0.0
    %769 = vmatpush.msra.mxu0 0.0
    %770 = vmatpush.msra.mxu0 0.0
    %771 = vmatpush.msra.mxu0 %v555
    %772 = vmatpush.msra.mxu0 %v553
    %773 = vmatpush.msra.mxu0 %v551
    %774 = vmatpush.msra.mxu0 %v549
    %775 = vmatpush.msra.mxu0 %v547
    %776 = vmatpush.msra.mxu0 %v545
    %777 = vmatpush.msra.mxu0 %v543
    %778 = vmatpush.msra.mxu0 %v541
    %779 = vmatmul.f32.gmra.mxu0 %v761
    %v780 = vpop.f32.mrf.mxu0
    %v781 = vadd.f32 0.0, %v780
    %782 = vdwg.mxu0
    %783 = vmatpush.msra.mxu0 0.0
    %784 = vmatpush.msra.mxu0 0.0
    %785 = vmatpush.msra.mxu0 0.0
    %786 = vmatpush.msra.mxu0 0.0
    %787 = vmatpush.msra.mxu0 0.0
    %788 = vmatpush.msra.mxu0 0.0
    %789 = vmatpush.msra.mxu0 0.0
    %790 = vmatpush.msra.mxu0 0.0
    %791 = vmatpush.msra.mxu0 %v556
    %792 = vmatpush.msra.mxu0 %v554
    %793 = vmatpush.msra.mxu0 %v552
    %794 = vmatpush.msra.mxu0 %v550
    %795 = vmatpush.msra.mxu0 %v548
    %796 = vmatpush.msra.mxu0 %v546
    %797 = vmatpush.msra.mxu0 %v544
    %798 = vmatpush.msra.mxu0 %v542
    %799 = vmatmul.f32.gmra.mxu0 %v761
    %v800 = vpop.f32.mrf.mxu0
    %v801 = vadd.f32 0.0, %v800
    %802 = vdwg.mxu0
    %v803 = vadd.f32 %v513, %v781
    %v804 = vadd.f32 %v514, %v801
    %v805 = vxor.u32 %v803, 2147483648
    %v806 = vxor.u32 %v804, 2147483648
    %v807 = vmul.f32 %v805, 1.442695
    %v808 = vpow.pop %v807
    %v809 = vmul.f32 %v806, 1.442695
    %v810 = vpow.pop %v809
    %v811 = vadd.f32 %v808, 1.0
    %v812 = vadd.f32 %v810, 1.0
    %v813 = vrcp.pop %v811
    %v814 = vmul.f32 %v811, %v813
    %v815 = vsub.f32 1.0, %v814
    %v816 = vmul.f32 %v813, %v815
    %v817 = vadd.f32 %v813, %v816
    %vm818 = vweird.f32 %v811
    %vm819 = vweird.f32 %v813
    %vm820 = vmor %vm818, %vm819
    %v821 = vsel %vm820, %v813, %v817
    %v822 = vand.u32 2147483647, %v811
    %vm823 = vcmp.eq.f32.partialorder %v822, 8.507059e+37
    %v824 = vand.u32 %v811, 2147483648
    %v825 = vor.u32 1.1754944e-38, %v824
    %v826 = vsel %vm823, %v825, %v821
    %v827 = vmul.f32 1.0, %v826
    %v828 = vrcp.pop %v812
    %v829 = vmul.f32 %v812, %v828
    %v830 = vsub.f32 1.0, %v829
    %v831 = vmul.f32 %v828, %v830
    %v832 = vadd.f32 %v828, %v831
    %vm833 = vweird.f32 %v812
    %vm834 = vweird.f32 %v828
    %vm835 = vmor %vm833, %vm834
    %v836 = vsel %vm835, %v828, %v832
    %v837 = vand.u32 2147483647, %v812
    %vm838 = vcmp.eq.f32.partialorder %v837, 8.507059e+37
    %v839 = vand.u32 %v812, 2147483648
    %v840 = vor.u32 1.1754944e-38, %v839
    %v841 = vsel %vm838, %v840, %v836
    %v842 = vmul.f32 1.0, %v841
    %v843 = vtanh.pop %v804
    %v844 = vmul.f32 %v827, %v753
    %846 = vrot.lane.b32.xlu0 %v843, 64
    %v847 = vpop.permute.xlu0 %846
    %v849 = vmul.f32 %v827, %v847
    %851 = vrot.lane.b32.xlu0 %v849, 64
    %v852 = vpop.permute.xlu0 %851
    %v854 = vadd.f32 %v844, %v852
    %v855 = vtanh.pop %v854
    %857 = vrot.lane.b32.xlu0 %v855, 64
    %v858 = vpop.permute.xlu0 %857
    %v860 = vmul.f32 %v842, %v858
    %v862 = vsel %vm557, %v860, 0
    %864 = vmatpush.msra.mxu0 0.0
    %865 = vmatpush.msra.mxu0 0.0
    %866 = vmatpush.msra.mxu0 0.0
    %867 = vmatpush.msra.mxu0 0.0
    %868 = vmatpush.msra.mxu0 0.0
    %869 = vmatpush.msra.mxu0 0.0
    %870 = vmatpush.msra.mxu0 0.0
    %871 = vmatpush.msra.mxu0 0.0
    %872 = vmatpush.msra.mxu0 %v555
    %873 = vmatpush.msra.mxu0 %v553
    %874 = vmatpush.msra.mxu0 %v551
    %875 = vmatpush.msra.mxu0 %v549
    %876 = vmatpush.msra.mxu0 %v547
    %877 = vmatpush.msra.mxu0 %v545
    %878 = vmatpush.msra.mxu0 %v543
    %879 = vmatpush.msra.mxu0 %v541
    %880 = vmatmul.f32.gmra.mxu0 %v862
    %v881 = vpop.f32.mrf.mxu0
    %v882 = vadd.f32 0.0, %v881
    %883 = vdwg.mxu0
    %884 = vmatpush.msra.mxu0 0.0
    %885 = vmatpush.msra.mxu0 0.0
    %886 = vmatpush.msra.mxu0 0.0
    %887 = vmatpush.msra.mxu0 0.0
    %888 = vmatpush.msra.mxu0 0.0
    %889 = vmatpush.msra.mxu0 0.0
    %890 = vmatpush.msra.mxu0 0.0
    %891 = vmatpush.msra.mxu0 0.0
    %892 = vmatpush.msra.mxu0 %v556
    %893 = vmatpush.msra.mxu0 %v554
    %894 = vmatpush.msra.mxu0 %v552
    %895 = vmatpush.msra.mxu0 %v550
    %896 = vmatpush.msra.mxu0 %v548
    %897 = vmatpush.msra.mxu0 %v546
    %898 = vmatpush.msra.mxu0 %v544
    %899 = vmatpush.msra.mxu0 %v542
    %900 = vmatmul.f32.gmra.mxu0 %v862
    %v901 = vpop.f32.mrf.mxu0
    %v902 = vadd.f32 0.0, %v901
    %903 = vdwg.mxu0
    %v904 = vadd.f32 %v531, %v882
    %v905 = vadd.f32 %v532, %v902
    %v906 = vxor.u32 %v904, 2147483648
    %v907 = vxor.u32 %v905, 2147483648
    %v908 = vmul.f32 %v906, 1.442695
    %v909 = vpow.pop %v908
    %v910 = vmul.f32 %v907, 1.442695
    %v911 = vpow.pop %v910
    %v912 = vadd.f32 %v909, 1.0
    %v913 = vadd.f32 %v911, 1.0
    %v914 = vrcp.pop %v912
    %v915 = vmul.f32 %v912, %v914
    %v916 = vsub.f32 1.0, %v915
    %v917 = vmul.f32 %v914, %v916
    %v918 = vadd.f32 %v914, %v917
    %vm919 = vweird.f32 %v912
    %vm920 = vweird.f32 %v914
    %vm921 = vmor %vm919, %vm920
    %v922 = vsel %vm921, %v914, %v918
    %v923 = vand.u32 2147483647, %v912
    %vm924 = vcmp.eq.f32.partialorder %v923, 8.507059e+37
    %v925 = vand.u32 %v912, 2147483648
    %v926 = vor.u32 1.1754944e-38, %v925
    %v927 = vsel %vm924, %v926, %v922
    %v928 = vmul.f32 1.0, %v927
    %v929 = vrcp.pop %v913
    %v930 = vmul.f32 %v913, %v929
    %v931 = vsub.f32 1.0, %v930
    %v932 = vmul.f32 %v929, %v931
    %v933 = vadd.f32 %v929, %v932
    %vm934 = vweird.f32 %v913
    %vm935 = vweird.f32 %v929
    %vm936 = vmor %vm934, %vm935
    %v937 = vsel %vm936, %v929, %v933
    %v938 = vand.u32 2147483647, %v913
    %vm939 = vcmp.eq.f32.partialorder %v938, 8.507059e+37
    %v940 = vand.u32 %v913, 2147483648
    %v941 = vor.u32 1.1754944e-38, %v940
    %v942 = vsel %vm939, %v941, %v937
    %v943 = vmul.f32 1.0, %v942
    %v944 = vtanh.pop %v905
    %v945 = vmul.f32 %v928, %v854
    %947 = vrot.lane.b32.xlu0 %v944, 64
    %v948 = vpop.permute.xlu0 %947
    %v950 = vmul.f32 %v928, %v948
    %952 = vrot.lane.b32.xlu0 %v950, 64
    %v953 = vpop.permute.xlu0 %952
    %v955 = vadd.f32 %v945, %v953
    %v956 = vtanh.pop %v955
    %958 = vrot.lane.b32.xlu0 %v956, 64
    %v959 = vpop.permute.xlu0 %958
    %v961 = vmul.f32 %v943, %v959
    %v963 = vsel %vm557, %v961, 0
    %965 = vmatpush.msra.mxu0 0.0
    %966 = vmatpush.msra.mxu0 0.0
    %967 = vmatpush.msra.mxu0 0.0
    %968 = vmatpush.msra.mxu0 0.0
    %969 = vmatpush.msra.mxu0 0.0
    %970 = vmatpush.msra.mxu0 0.0
    %971 = vmatpush.msra.mxu0 0.0
    %972 = vmatpush.msra.mxu0 0.0
    %973 = vmatpush.msra.mxu0 %v555
    %974 = vmatpush.msra.mxu0 %v553
    %975 = vmatpush.msra.mxu0 %v551
    %976 = vmatpush.msra.mxu0 %v549
    %977 = vmatpush.msra.mxu0 %v547
    %978 = vmatpush.msra.mxu0 %v545
    %979 = vmatpush.msra.mxu0 %v543
    %980 = vmatpush.msra.mxu0 %v541
    %981 = vmatmul.f32.gmra.mxu0 %v963
    %v982 = vpop.f32.mrf.mxu0
    %v983 = vadd.f32 0.0, %v982
    %984 = vdwg.mxu0
    %985 = vmatpush.msra.mxu0 0.0
    %986 = vmatpush.msra.mxu0 0.0
    %987 = vmatpush.msra.mxu0 0.0
    %988 = vmatpush.msra.mxu0 0.0
    %989 = vmatpush.msra.mxu0 0.0
    %990 = vmatpush.msra.mxu0 0.0
    %991 = vmatpush.msra.mxu0 0.0
    %992 = vmatpush.msra.mxu0 0.0
    %993 = vmatpush.msra.mxu0 %v556
    %994 = vmatpush.msra.mxu0 %v554
    %995 = vmatpush.msra.mxu0 %v552
    %996 = vmatpush.msra.mxu0 %v550
    %997 = vmatpush.msra.mxu0 %v548
    %998 = vmatpush.msra.mxu0 %v546
    %999 = vmatpush.msra.mxu0 %v544
    %1000 = vmatpush.msra.mxu0 %v542
    %1001 = vmatmul.f32.gmra.mxu0 %v963
    %v1002 = vpop.f32.mrf.mxu0
    %v1003 = vadd.f32 0.0, %v1002
    %1004 = vdwg.mxu0
    %v1005 = vadd.f32 %v533, %v983
    %v1006 = vadd.f32 %v534, %v1003
    %v1007 = vxor.u32 %v1005, 2147483648
    %v1008 = vxor.u32 %v1006, 2147483648
    %v1009 = vmul.f32 %v1007, 1.442695
    %v1010 = vpow.pop %v1009
    %v1011 = vmul.f32 %v1008, 1.442695
    %v1012 = vpow.pop %v1011
    %v1013 = vadd.f32 %v1010, 1.0
    %v1014 = vadd.f32 %v1012, 1.0
    %v1015 = vrcp.pop %v1013
    %v1016 = vmul.f32 %v1013, %v1015
    %v1017 = vsub.f32 1.0, %v1016
    %v1018 = vmul.f32 %v1015, %v1017
    %v1019 = vadd.f32 %v1015, %v1018
    %vm1020 = vweird.f32 %v1013
    %vm1021 = vweird.f32 %v1015
    %vm1022 = vmor %vm1020, %vm1021
    %v1023 = vsel %vm1022, %v1015, %v1019
    %v1024 = vand.u32 2147483647, %v1013
    %vm1025 = vcmp.eq.f32.partialorder %v1024, 8.507059e+37
    %v1026 = vand.u32 %v1013, 2147483648
    %v1027 = vor.u32 1.1754944e-38, %v1026
    %v1028 = vsel %vm1025, %v1027, %v1023
    %v1029 = vmul.f32 1.0, %v1028
    %v1030 = vrcp.pop %v1014
    %v1031 = vmul.f32 %v1014, %v1030
    %v1032 = vsub.f32 1.0, %v1031
    %v1033 = vmul.f32 %v1030, %v1032
    %v1034 = vadd.f32 %v1030, %v1033
    %vm1035 = vweird.f32 %v1014
    %vm1036 = vweird.f32 %v1030
    %vm1037 = vmor %vm1035, %vm1036
    %v1038 = vsel %vm1037, %v1030, %v1034
    %v1039 = vand.u32 2147483647, %v1014
    %vm1040 = vcmp.eq.f32.partialorder %v1039, 8.507059e+37
    %v1041 = vand.u32 %v1014, 2147483648
    %v1042 = vor.u32 1.1754944e-38, %v1041
    %v1043 = vsel %vm1040, %v1042, %v1038
    %v1044 = vmul.f32 1.0, %v1043
    %v1045 = vtanh.pop %v1006
    %v1046 = vmul.f32 %v1029, %v955
    %1048 = vrot.lane.b32.xlu0 %v1045, 64
    %v1049 = vpop.permute.xlu0 %1048
    %v1051 = vmul.f32 %v1029, %v1049
    %1053 = vrot.lane.b32.xlu0 %v1051, 64
    %v1054 = vpop.permute.xlu0 %1053
    %v1056 = vadd.f32 %v1046, %v1054
    %v1057 = vtanh.pop %v1056
    %1059 = vrot.lane.b32.xlu0 %v1057, 64
    %v1060 = vpop.permute.xlu0 %1059
    %v1062 = vmul.f32 %v1044, %v1060
    %v1064 = vsel %vm557, %v1062, 0
    %1066 = vmatpush.msra.mxu0 0.0
    %1067 = vmatpush.msra.mxu0 0.0
    %1068 = vmatpush.msra.mxu0 0.0
    %1069 = vmatpush.msra.mxu0 0.0
    %1070 = vmatpush.msra.mxu0 0.0
    %1071 = vmatpush.msra.mxu0 0.0
    %1072 = vmatpush.msra.mxu0 0.0
    %1073 = vmatpush.msra.mxu0 0.0
    %1074 = vmatpush.msra.mxu0 %v555
    %1075 = vmatpush.msra.mxu0 %v553
    %1076 = vmatpush.msra.mxu0 %v551
    %1077 = vmatpush.msra.mxu0 %v549
    %1078 = vmatpush.msra.mxu0 %v547
    %1079 = vmatpush.msra.mxu0 %v545
    %1080 = vmatpush.msra.mxu0 %v543
    %1081 = vmatpush.msra.mxu0 %v541
    %1082 = vmatmul.f32.gmra.mxu0 %v1064
    %v1083 = vpop.f32.mrf.mxu0
    %v1084 = vadd.f32 0.0, %v1083
    %1085 = vdwg.mxu0
    %1086 = vmatpush.msra.mxu0 0.0
    %1087 = vmatpush.msra.mxu0 0.0
    %1088 = vmatpush.msra.mxu0 0.0
    %1089 = vmatpush.msra.mxu0 0.0
    %1090 = vmatpush.msra.mxu0 0.0
    %1091 = vmatpush.msra.mxu0 0.0
    %1092 = vmatpush.msra.mxu0 0.0
    %1093 = vmatpush.msra.mxu0 0.0
    %1094 = vmatpush.msra.mxu0 %v556
    %1095 = vmatpush.msra.mxu0 %v554
    %1096 = vmatpush.msra.mxu0 %v552
    %1097 = vmatpush.msra.mxu0 %v550
    %1098 = vmatpush.msra.mxu0 %v548
    %1099 = vmatpush.msra.mxu0 %v546
    %1100 = vmatpush.msra.mxu0 %v544
    %1101 = vmatpush.msra.mxu0 %v542
    %1102 = vmatmul.f32.gmra.mxu0 %v1064
    %v1103 = vpop.f32.mrf.mxu0
    %v1104 = vadd.f32 0.0, %v1103
    %1105 = vdwg.mxu0
    %v1106 = vadd.f32 %v535, %v1084
    %v1107 = vadd.f32 %v536, %v1104
    %v1108 = vxor.u32 %v1106, 2147483648
    %v1109 = vxor.u32 %v1107, 2147483648
    %v1110 = vmul.f32 %v1108, 1.442695
    %v1111 = vpow.pop %v1110
    %v1112 = vmul.f32 %v1109, 1.442695
    %v1113 = vpow.pop %v1112
    %v1114 = vadd.f32 %v1111, 1.0
    %v1115 = vadd.f32 %v1113, 1.0
    %v1116 = vrcp.pop %v1114
    %v1117 = vmul.f32 %v1114, %v1116
    %v1118 = vsub.f32 1.0, %v1117
    %v1119 = vmul.f32 %v1116, %v1118
    %v1120 = vadd.f32 %v1116, %v1119
    %vm1121 = vweird.f32 %v1114
    %vm1122 = vweird.f32 %v1116
    %vm1123 = vmor %vm1121, %vm1122
    %v1124 = vsel %vm1123, %v1116, %v1120
    %v1125 = vand.u32 2147483647, %v1114
    %vm1126 = vcmp.eq.f32.partialorder %v1125, 8.507059e+37
    %v1127 = vand.u32 %v1114, 2147483648
    %v1128 = vor.u32 1.1754944e-38, %v1127
    %v1129 = vsel %vm1126, %v1128, %v1124
    %v1130 = vmul.f32 1.0, %v1129
    %v1131 = vrcp.pop %v1115
    %v1132 = vmul.f32 %v1115, %v1131
    %v1133 = vsub.f32 1.0, %v1132
    %v1134 = vmul.f32 %v1131, %v1133
    %v1135 = vadd.f32 %v1131, %v1134
    %vm1136 = vweird.f32 %v1115
    %vm1137 = vweird.f32 %v1131
    %vm1138 = vmor %vm1136, %vm1137
    %v1139 = vsel %vm1138, %v1131, %v1135
    %v1140 = vand.u32 2147483647, %v1115
    %vm1141 = vcmp.eq.f32.partialorder %v1140, 8.507059e+37
    %v1142 = vand.u32 %v1115, 2147483648
    %v1143 = vor.u32 1.1754944e-38, %v1142
    %v1144 = vsel %vm1141, %v1143, %v1139
    %v1145 = vmul.f32 1.0, %v1144
    %v1146 = vtanh.pop %v1107
    %v1147 = vmul.f32 %v1130, %v1056
    %1149 = vrot.lane.b32.xlu0 %v1146, 64
    %v1150 = vpop.permute.xlu0 %1149
    %v1152 = vmul.f32 %v1130, %v1150
    %1154 = vrot.lane.b32.xlu0 %v1152, 64
    %v1155 = vpop.permute.xlu0 %1154
    %v1157 = vadd.f32 %v1147, %v1155
    %v1158 = vtanh.pop %v1157
    %1160 = vrot.lane.b32.xlu0 %v1158, 64
    %v1161 = vpop.permute.xlu0 %1160
    %v1163 = vmul.f32 %v1145, %v1161
    %v1165 = vsel %vm557, %v1163, 0
    %1167 = vmatpush.msra.mxu0 0.0
    %1168 = vmatpush.msra.mxu0 0.0
    %1169 = vmatpush.msra.mxu0 0.0
    %1170 = vmatpush.msra.mxu0 0.0
    %1171 = vmatpush.msra.mxu0 0.0
    %1172 = vmatpush.msra.mxu0 0.0
    %1173 = vmatpush.msra.mxu0 0.0
    %1174 = vmatpush.msra.mxu0 0.0
    %1175 = vmatpush.msra.mxu0 %v555
    %1176 = vmatpush.msra.mxu0 %v553
    %1177 = vmatpush.msra.mxu0 %v551
    %1178 = vmatpush.msra.mxu0 %v549
    %1179 = vmatpush.msra.mxu0 %v547
    %1180 = vmatpush.msra.mxu0 %v545
    %1181 = vmatpush.msra.mxu0 %v543
    %1182 = vmatpush.msra.mxu0 %v541
    %1183 = vmatmul.f32.gmra.mxu0 %v1165
    %v1184 = vpop.f32.mrf.mxu0
    %v1185 = vadd.f32 0.0, %v1184
    %1186 = vdwg.mxu0
    %1187 = vmatpush.msra.mxu0 0.0
    %1188 = vmatpush.msra.mxu0 0.0
    %1189 = vmatpush.msra.mxu0 0.0
    %1190 = vmatpush.msra.mxu0 0.0
    %1191 = vmatpush.msra.mxu0 0.0
    %1192 = vmatpush.msra.mxu0 0.0
    %1193 = vmatpush.msra.mxu0 0.0
    %1194 = vmatpush.msra.mxu0 0.0
    %1195 = vmatpush.msra.mxu0 %v556
    %1196 = vmatpush.msra.mxu0 %v554
    %1197 = vmatpush.msra.mxu0 %v552
    %1198 = vmatpush.msra.mxu0 %v550
    %1199 = vmatpush.msra.mxu0 %v548
    %1200 = vmatpush.msra.mxu0 %v546
    %1201 = vmatpush.msra.mxu0 %v544
    %1202 = vmatpush.msra.mxu0 %v542
    %1203 = vmatmul.f32.gmra.mxu0 %v1165
    %v1204 = vpop.f32.mrf.mxu0
    %v1205 = vadd.f32 0.0, %v1204
    %1206 = vdwg.mxu0
    %v1207 = vadd.f32 %v537, %v1185
    %v1208 = vadd.f32 %v538, %v1205
    %v1209 = vxor.u32 %v1207, 2147483648
    %v1210 = vxor.u32 %v1208, 2147483648
    %v1211 = vmul.f32 %v1209, 1.442695
    %v1212 = vpow.pop %v1211
    %v1213 = vmul.f32 %v1210, 1.442695
    %v1214 = vpow.pop %v1213
    %v1215 = vadd.f32 %v1212, 1.0
    %v1216 = vadd.f32 %v1214, 1.0
    %v1217 = vrcp.pop %v1215
    %v1218 = vmul.f32 %v1215, %v1217
    %v1219 = vsub.f32 1.0, %v1218
    %v1220 = vmul.f32 %v1217, %v1219
    %v1221 = vadd.f32 %v1217, %v1220
    %vm1222 = vweird.f32 %v1215
    %vm1223 = vweird.f32 %v1217
    %vm1224 = vmor %vm1222, %vm1223
    %v1225 = vsel %vm1224, %v1217, %v1221
    %v1226 = vand.u32 2147483647, %v1215
    %vm1227 = vcmp.eq.f32.partialorder %v1226, 8.507059e+37
    %v1228 = vand.u32 %v1215, 2147483648
    %v1229 = vor.u32 1.1754944e-38, %v1228
    %v1230 = vsel %vm1227, %v1229, %v1225
    %v1231 = vmul.f32 1.0, %v1230
    %v1232 = vrcp.pop %v1216
    %v1233 = vmul.f32 %v1216, %v1232
    %v1234 = vsub.f32 1.0, %v1233
    %v1235 = vmul.f32 %v1232, %v1234
    %v1236 = vadd.f32 %v1232, %v1235
    %vm1237 = vweird.f32 %v1216
    %vm1238 = vweird.f32 %v1232
    %vm1239 = vmor %vm1237, %vm1238
    %v1240 = vsel %vm1239, %v1232, %v1236
    %v1241 = vand.u32 2147483647, %v1216
    %vm1242 = vcmp.eq.f32.partialorder %v1241, 8.507059e+37
    %v1243 = vand.u32 %v1216, 2147483648
    %v1244 = vor.u32 1.1754944e-38, %v1243
    %v1245 = vsel %vm1242, %v1244, %v1240
    %v1246 = vmul.f32 1.0, %v1245
    %v1247 = vtanh.pop %v1208
    %v1248 = vmul.f32 %v1231, %v1157
    %1250 = vrot.lane.b32.xlu0 %v1247, 64
    %v1251 = vpop.permute.xlu0 %1250
    %v1253 = vmul.f32 %v1231, %v1251
    %1255 = vrot.lane.b32.xlu0 %v1253, 64
    %v1256 = vpop.permute.xlu0 %1255
    %v1258 = vadd.f32 %v1248, %v1256
    %v1259 = vtanh.pop %v1258
    %1261 = vrot.lane.b32.xlu0 %v1259, 64
    %v1262 = vpop.permute.xlu0 %1261
    %v1264 = vmul.f32 %v1246, %v1262
    %v1266 = vsel %vm557, %v1264, 0
    %1268 = vmatpush.msra.mxu0 0.0
    %1269 = vmatpush.msra.mxu0 0.0
    %1270 = vmatpush.msra.mxu0 0.0
    %1271 = vmatpush.msra.mxu0 0.0
    %1272 = vmatpush.msra.mxu0 0.0
    %1273 = vmatpush.msra.mxu0 0.0
    %1274 = vmatpush.msra.mxu0 0.0
    %1275 = vmatpush.msra.mxu0 0.0
    %1276 = vmatpush.msra.mxu0 %v555
    %1277 = vmatpush.msra.mxu0 %v553
    %1278 = vmatpush.msra.mxu0 %v551
    %1279 = vmatpush.msra.mxu0 %v549
    %1280 = vmatpush.msra.mxu0 %v547
    %1281 = vmatpush.msra.mxu0 %v545
    %1282 = vmatpush.msra.mxu0 %v543
    %1283 = vmatpush.msra.mxu0 %v541
    %1284 = vmatmul.f32.gmra.mxu0 %v1266
    %v1285 = vpop.f32.mrf.mxu0
    %v1286 = vadd.f32 0.0, %v1285
    %1287 = vdwg.mxu0
    %1288 = vmatpush.msra.mxu0 0.0
    %1289 = vmatpush.msra.mxu0 0.0
    %1290 = vmatpush.msra.mxu0 0.0
    %1291 = vmatpush.msra.mxu0 0.0
    %1292 = vmatpush.msra.mxu0 0.0
    %1293 = vmatpush.msra.mxu0 0.0
    %1294 = vmatpush.msra.mxu0 0.0
    %1295 = vmatpush.msra.mxu0 0.0
    %1296 = vmatpush.msra.mxu0 %v556
    %1297 = vmatpush.msra.mxu0 %v554
    %1298 = vmatpush.msra.mxu0 %v552
    %1299 = vmatpush.msra.mxu0 %v550
    %1300 = vmatpush.msra.mxu0 %v548
    %1301 = vmatpush.msra.mxu0 %v546
    %1302 = vmatpush.msra.mxu0 %v544
    %1303 = vmatpush.msra.mxu0 %v542
    %1304 = vmatmul.f32.gmra.mxu0 %v1266
    %v1305 = vpop.f32.mrf.mxu0
    %v1306 = vadd.f32 0.0, %v1305
    %1307 = vdwg.mxu0
    %v1308 = vadd.f32 %v539, %v1286
    %v1309 = vadd.f32 %v540, %v1306
    %v1310 = vxor.u32 %v1308, 2147483648
    %v1311 = vxor.u32 %v1309, 2147483648
    %v1312 = vmul.f32 %v1310, 1.442695
    %v1313 = vpow.pop %v1312
    %v1314 = vmul.f32 %v1311, 1.442695
    %v1315 = vpow.pop %v1314
    %v1316 = vadd.f32 %v1313, 1.0
    %v1317 = vadd.f32 %v1315, 1.0
    %v1318 = vrcp.pop %v1316
    %v1319 = vmul.f32 %v1316, %v1318
    %v1320 = vsub.f32 1.0, %v1319
    %v1321 = vmul.f32 %v1318, %v1320
    %v1322 = vadd.f32 %v1318, %v1321
    %vm1323 = vweird.f32 %v1316
    %vm1324 = vweird.f32 %v1318
    %vm1325 = vmor %vm1323, %vm1324
    %v1326 = vsel %vm1325, %v1318, %v1322
    %v1327 = vand.u32 2147483647, %v1316
    %vm1328 = vcmp.eq.f32.partialorder %v1327, 8.507059e+37
    %v1329 = vand.u32 %v1316, 2147483648
    %v1330 = vor.u32 1.1754944e-38, %v1329
    %v1331 = vsel %vm1328, %v1330, %v1326
    %v1332 = vmul.f32 1.0, %v1331
    %v1333 = vrcp.pop %v1317
    %v1334 = vmul.f32 %v1317, %v1333
    %v1335 = vsub.f32 1.0, %v1334
    %v1336 = vmul.f32 %v1333, %v1335
    %v1337 = vadd.f32 %v1333, %v1336
    %vm1338 = vweird.f32 %v1317
    %vm1339 = vweird.f32 %v1333
    %vm1340 = vmor %vm1338, %vm1339
    %v1341 = vsel %vm1340, %v1333, %v1337
    %v1342 = vand.u32 2147483647, %v1317
    %vm1343 = vcmp.eq.f32.partialorder %v1342, 8.507059e+37
    %v1344 = vand.u32 %v1317, 2147483648
    %v1345 = vor.u32 1.1754944e-38, %v1344
    %v1346 = vsel %vm1343, %v1345, %v1341
    %v1347 = vmul.f32 1.0, %v1346
    %v1348 = vtanh.pop %v1309
    %v1349 = vmul.f32 %v1332, %v1258
    %1351 = vrot.lane.b32.xlu0 %v1348, 64
    %v1352 = vpop.permute.xlu0 %1351
    %v1354 = vmul.f32 %v1332, %v1352
    %1356 = vrot.lane.b32.xlu0 %v1354, 64
    %v1357 = vpop.permute.xlu0 %1356
    %v1359 = vadd.f32 %v1349, %v1357
    %v1360 = vtanh.pop %v1359
    %1362 = vrot.lane.b32.xlu0 %v1360, 64
    %v1363 = vpop.permute.xlu0 %1362
    %v1365 = vmul.f32 %v1347, %v1363
    %v1366 = vld [vmem:[%s8] sm:$0xff]
    %v1367 = vld [vmem:[%s8 + $0x8] sm:$0xff]
    %v1368 = vld [vmem:[%s8 + $0x10] sm:$0xff]
    %v1369 = vld [vmem:[%s8 + $0x18] sm:$0xff]
    %v1370 = vld [vmem:[%s8 + $0x20] sm:$0xff]
    %v1371 = vld [vmem:[%s8 + $0x28] sm:$0xff]
    %v1372 = vld [vmem:[%s8 + $0x30] sm:$0xff]
    %v1373 = vld [vmem:[%s8 + $0x38] sm:$0xff]
    %v1374 = vld [vmem:[%s9] sm:$0x1]
    %v1376 = vperm.slane %v1374, 0
    %v1379 = vsel %vm557, %v1365, 0
    %1381 = vmatpush.msra.mxu0 0.0
    %1382 = vmatpush.msra.mxu0 0.0
    %1383 = vmatpush.msra.mxu0 0.0
    %1384 = vmatpush.msra.mxu0 0.0
    %1385 = vmatpush.msra.mxu0 0.0
    %1386 = vmatpush.msra.mxu0 0.0
    %1387 = vmatpush.msra.mxu0 0.0
    %1388 = vmatpush.msra.mxu0 0.0
    %1389 = vmatpush.msra.mxu0 %v1373
    %1390 = vmatpush.msra.mxu0 %v1372
    %1391 = vmatpush.msra.mxu0 %v1371
    %1392 = vmatpush.msra.mxu0 %v1370
    %1393 = vmatpush.msra.mxu0 %v1369
    %1394 = vmatpush.msra.mxu0 %v1368
    %1395 = vmatpush.msra.mxu0 %v1367
    %1396 = vmatpush.msra.mxu0 %v1366
    %1397 = vmatmul.f32.gmra.mxu0 %v1379
    %v1398 = vpop.f32.mrf.mxu0
    %v1399 = vadd.f32 %v1376, %v1398
    %1400 = vdwg.mxu0
    %vm1401 = vcmask 74752
    %1402 = vst.msk [vmem:[#allocation6] sm:$0x3] %vm1401, %v1399
    // Predicated region
    $region46: #{tpu_custom_call.1} parent=1 // pred_check
      _
    $region47: #{tpu_custom_call.1} parent=1 // pred_check_branch
      %1404 = sbr.rel (0) target = $region49
    $region48: #{tpu_custom_call.1} parent=1 // pred_region
      %1406 = vsyncadd [#allocation5], 0
      %s1408 = sshll.u32 [#allocation6], 4
      %s1409 = int_to_ptr.vmem [resolvable:$true] %s1408
      %s1410 = sshll.u32 %s10, 4
      %s1411 = int_to_ptr.hbm [resolvable:$true] %s1410
      %1413 = dma.vmem_to_hbm [thread:$0]  %s1409, 32, %s1411, [#allocation5]
    $region49: #{tpu_custom_call.1} parent=1 // pred_fallthru
      _
    // Predicated region
    $region50: #{tpu_custom_call.1} parent=1 // pred_check
      _
    $region51: #{tpu_custom_call.1} parent=1 // pred_check_branch
      %1415 = sbr.rel (0) target = $region53
    $region52: #{tpu_custom_call.1} parent=1 // pred_region
      %1417 = dma.done [#allocation5], 32
    $region53: #{tpu_custom_call.1} parent=1 // pred_fallthru
      _
    %1418 = vsyncpa [#allocation4], 1
    %1419 = vsyncpa [#allocation5], 1

</llo_original>
